<compile_context>
chip_gen: v7x
topology: tpu7x:2x2x1
jax: 0.10.0
libtpu: 0.0.40
codegen_flags: <defaults>
</compile_context>

<pallas_src>
import functools

import jax
import jax.numpy as jnp
from jax import lax
from jax.experimental import pallas as pl
from jax.experimental.pallas import tpu as pltpu

EPS = 1e-5  # PyTorch BatchNorm2d default eps


def _vmem_limit_bytes():
    try:
        cap = int(pltpu.get_tpu_info().vmem_capacity_bytes)
    except Exception:
        cap = 64 * 1024 * 1024
    return int(min(cap // 2, 96 * 1024 * 1024))


VMEM_LIMIT = _vmem_limit_bytes()
MAX_COLS = 8192  # lanes per tile (rows are tiny, so ~0.1-1 MiB per buffer)


# ---------------------------------------------------------------------------
# tile pickers
# ---------------------------------------------------------------------------
def _pick_cols_tile(m, max_cols=MAX_COLS, min_tiles=2):
    """Largest 128-multiple divisor of m that is <= max_cols, preferring >= min_tiles
    grid steps (v7x megacore).  Falls back to a single (possibly masked) block."""
    cands = [t for t in range(128, min(m, max_cols) + 1, 128) if m % t == 0]
    if not cands:
        return m
    pref = [t for t in cands if m // t >= min_tiles]
    return max(pref) if pref else max(cands)


def _pick_cols_tile_deconv(m, hw, max_cols=MAX_COLS, min_tiles=2):
    """Deconv tiles must cover whole images so in-tile lane rolls never need data
    from a neighbouring tile."""
    n = m // hw
    if hw >= max_cols:
        # TODO(synk): row-strip + halo path for very large images (whole-image tile
        # here is only guarded by vmem_limit_bytes).
        return hw
    ks = [k for k in range(1, n + 1) if n % k == 0 and k * hw <= max_cols]
    pref = [k for k in ks if n // k >= min_tiles]
    k = max(pref) if pref else max(ks)
    return k * hw


# ---------------------------------------------------------------------------
# shared: per-tile BN partial stats (sum + centered sum-of-squares)
# ---------------------------------------------------------------------------
def _write_stats(u, s_ref):
    # u: (R, tcol) f32.  Stable parallel-variance partials, combined in wrapper.
    tcol = u.shape[1]
    s = jnp.sum(u, axis=1, keepdims=True)                      # (R, 1)
    mu = s * (1.0 / tcol)
    m2 = jnp.sum(jnp.square(u - mu), axis=1, keepdims=True)    # (R, 1)
    s_ref[0] = jnp.concatenate([s, m2], axis=1)                # (R, 2)


def _bn_scale_shift(stats, tile_cols, gamma, beta, fold=1):
    # stats: (nt, R, 2); rows grouped as channel*fold + parity when fold>1.
    s = stats[..., 0]          # (nt, R) per-group sums
    m2 = stats[..., 1]         # (nt, R) per-group centered sq-sums
    nt, R = s.shape
    c = R // fold
    s = s.reshape(nt, c, fold)
    m2 = m2.reshape(nt, c, fold)
    count = nt * fold * tile_cols
    mean = s.sum(axis=(0, 2)) / count
    gmean = s / tile_cols
    m2_tot = m2.sum(axis=(0, 2)) + (
        tile_cols * jnp.square(gmean - mean[None, :, None])
    ).sum(axis=(0, 2))
    var = m2_tot / count        # biased variance (training-mode BN)
    scale = gamma * lax.rsqrt(var + EPS)
    shift = beta - mean * scale
    return scale.reshape(-1, 1), shift.reshape(-1, 1)


# ---------------------------------------------------------------------------
# K1: 1x1 conv (+bias) producing pre-BN activations, fused BN1 partial stats.
#     Reads x as (N, Cin, HW) directly (no wrapper transpose); writes the
#     channel-major slab u1 of shape (Cout, N*HW).
# ---------------------------------------------------------------------------
def _conv1x1_stats_kernel(x_ref, w_ref, b_ref, u_ref, s_ref):
    x = x_ref[0]                                                     # (Cin, tc)
    u = jnp.dot(w_ref[...], x, preferred_element_type=jnp.float32) + b_ref[...]
    u_ref[...] = u.astype(u_ref.dtype)
    _write_stats(u, s_ref)


def conv1x1_with_stats(x3, w, b, tcol, out_dtype):
    n, ci, hw = x3.shape
    co = w.shape[0]
    ntc = hw // tcol
    nt = n * ntc
    return pl.pallas_call(
        _conv1x1_stats_kernel,
        out_shape=(jax.ShapeDtypeStruct((co, n * hw), out_dtype),
                   jax.ShapeDtypeStruct((nt, co, 2), jnp.float32)),
        grid=(n, ntc),
        in_specs=[
            pl.BlockSpec((1, ci, tcol), lambda b_, i: (b_, 0, i)),
            pl.BlockSpec((co, ci), lambda b_, i: (0, 0)),
            pl.BlockSpec((co, 1), lambda b_, i: (0, 0)),
        ],
        out_specs=(
            pl.BlockSpec((co, tcol), lambda b_, i: (0, b_ * ntc + i)),
            pl.BlockSpec((1, co, 2), lambda b_, i: (b_ * ntc + i, 0, 0)),
        ),
        compiler_params=pltpu.CompilerParams(
            dimension_semantics=("parallel", "parallel"),
            vmem_limit_bytes=VMEM_LIMIT),
    )(x3, w, b)


# ---------------------------------------------------------------------------
# K2: BN1+ReLU prologue, 4-tap gather via XLU rolls + precomputed border masks,
#     subpixel deconv matmul, parity-planar output rows (co*4 + parity),
#     fused BN2 partial stats.
# ---------------------------------------------------------------------------
def _deconv_kernel(u1_ref, sc_ref, sh_ref, mask_ref, w_ref, b_ref,
                   u2_ref, s_ref, *, W):
    tcol = u1_ref.shape[1]
    y = jnp.maximum(u1_ref[...].astype(jnp.float32) * sc_ref[...] + sh_ref[...], 0.0)

    m = mask_ref[...]                         # (3, tcol): right, down, right&down
    right_m = m[0:1, :]
    down_m = m[1:2, :]
    both_m = m[2:3, :]

    # Taps via lane rotations (XLU); wrapped lanes are always masked to zero
    # (they fall on the last image row / column), reproducing the transposed
    # conv's implicit zero padding.
    t01 = pltpu.roll(y, tcol - 1, axis=1) * right_m
    t10 = pltpu.roll(y, tcol - W, axis=1) * down_m
    t11 = pltpu.roll(y, tcol - W - 1, axis=1) * both_m
    taps = jnp.concatenate([y, t01, t10, t11], axis=0)               # (4c, tcol)

    u2 = jnp.dot(w_ref[...], taps, preferred_element_type=jnp.float32) + b_ref[...]
    u2_ref[...] = u2.astype(u2_ref.dtype)                            # rows: co*4+parity
    _write_stats(u2, s_ref)


def deconv_subpixel_with_stats(u1, sc1, sh1, masks, w2, b2, W, tcol, out_dtype):
    c = u1.shape[0]
    m = u1.shape[1]
    nt = m // tcol
    kernel = functools.partial(_deconv_kernel, W=W)
    return pl.pallas_call(
        kernel,
        out_shape=(jax.ShapeDtypeStruct((4 * c, m), out_dtype),
                   jax.ShapeDtypeStruct((nt, 4 * c, 2), jnp.float32)),
        grid=(nt,),
        in_specs=[
            pl.BlockSpec((c, tcol), lambda i: (0, i)),
            pl.BlockSpec((c, 1), lambda i: (0, 0)),
            pl.BlockSpec((c, 1), lambda i: (0, 0)),
            pl.BlockSpec((3, tcol), lambda i: (0, 0)),
            pl.BlockSpec((4 * c, 4 * c), lambda i: (0, 0)),
            pl.BlockSpec((4 * c, 1), lambda i: (0, 0)),
        ],
        out_specs=(
            pl.BlockSpec((4 * c, tcol), lambda i: (0, i)),
            pl.BlockSpec((1, 4 * c, 2), lambda i: (i, 0, 0)),
        ),
        compiler_params=pltpu.CompilerParams(
            dimension_semantics=("parallel",), vmem_limit_bytes=VMEM_LIMIT),
    )(u1, sc1, sh1, masks, w2, b2)


# ---------------------------------------------------------------------------
# K3a: BN2+ReLU prologue + 1x1 conv, BN3 partial stats only (cheap pre-pass)
# K3b: BN2+ReLU prologue + 1x1 conv with BN3+ReLU folded into weights/bias
# ---------------------------------------------------------------------------
def _bn_matmul_stats_kernel(u2_ref, sc_ref, sh_ref, w_ref, b_ref, s_ref):
    y = jnp.maximum(u2_ref[...].astype(jnp.float32) * sc_ref[...] + sh_ref[...], 0.0)
    u3 = jnp.dot(w_ref[...], y, preferred_element_type=jnp.float32) + b_ref[...]
    _write_stats(u3, s_ref)


def bn_matmul_stats(u2, sc2, sh2, w3, b3, tcol):
    r_in = u2.shape[0]
    r_out = w3.shape[0]
    m = u2.shape[1]
    nt = m // tcol
    return pl.pallas_call(
        _bn_matmul_stats_kernel,
        out_shape=jax.ShapeDtypeStruct((nt, r_out, 2), jnp.float32),
        grid=(nt,),
        in_specs=[
            pl.BlockSpec((r_in, tcol), lambda i: (0, i)),
            pl.BlockSpec((r_in, 1), lambda i: (0, 0)),
            pl.BlockSpec((r_in, 1), lambda i: (0, 0)),
            pl.BlockSpec((r_out, r_in), lambda i: (0, 0)),
            pl.BlockSpec((r_out, 1), lambda i: (0, 0)),
        ],
        out_specs=pl.BlockSpec((1, r_out, 2), lambda i: (i, 0, 0)),
        compiler_params=pltpu.CompilerParams(
            dimension_semantics=("parallel",), vmem_limit_bytes=VMEM_LIMIT),
    )(u2, sc2, sh2, w3, b3)


def _bn_matmul_relu_kernel(u2_ref, sc_ref, sh_ref, w_ref, b_ref, o_ref):
    y = jnp.maximum(u2_ref[...].astype(jnp.float32) * sc_ref[...] + sh_ref[...], 0.0)
    o_ref[...] = jnp.maximum(
        jnp.dot(w_ref[...], y, preferred_element_type=jnp.float32) + b_ref[...],
        0.0).astype(o_ref.dtype)


def bn_matmul_bn_relu(u2, sc2, sh2, w3f, b3f, tcol):
    r_in = u2.shape[0]
    r_out = w3f.shape[0]
    m = u2.shape[1]
    nt = m // tcol
    return pl.pallas_call(
        _bn_matmul_relu_kernel,
        out_shape=jax.ShapeDtypeStruct((r_out, m), jnp.float32),
        grid=(nt,),
        in_specs=[
            pl.BlockSpec((r_in, tcol), lambda i: (0, i)),
            pl.BlockSpec((r_in, 1), lambda i: (0, 0)),
            pl.BlockSpec((r_in, 1), lambda i: (0, 0)),
            pl.BlockSpec((r_out, r_in), lambda i: (0, 0)),
            pl.BlockSpec((r_out, 1), lambda i: (0, 0)),
        ],
        out_specs=pl.BlockSpec((r_out, tcol), lambda i: (0, i)),
        compiler_params=pltpu.CompilerParams(
            dimension_semantics=("parallel",), vmem_limit_bytes=VMEM_LIMIT),
    )(u2, sc2, sh2, w3f, b3f)


# ---------------------------------------------------------------------------
# ConvTranspose2d(k=3, stride=2, pad=1, out_pad=1) as one matmul (subpixel decomp.)
# ---------------------------------------------------------------------------
def build_deconv_matmul_weight(wt, c):
    # wt: ConvTranspose2d weight (Cin, Cout, 3, 3), Cin == Cout == c.
    # rows = tap*c + ci, cols = parity*c + co  (validated mapping).
    wbig = jnp.zeros((4 * c, 4 * c), jnp.float32)
    taps = {
        (0, 0): (1, 1),
        (0, 1): (1, 2), (1, 1): (1, 0),
        (0, 2): (2, 1), (2, 2): (0, 1),
        (0, 3): (2, 2), (1, 3): (2, 0), (2, 3): (0, 2), (3, 3): (0, 0),
    }
    for (t, p), (ky, kx) in taps.items():
        wbig = wbig.at[t * c:(t + 1) * c, p * c:(p + 1) * c].set(wt[:, :, ky, kx])
    return wbig


def build_deconv_weight_channel_major(wt, c):
    # -> (4c, 4c): rows ordered co*4 + parity, cols ordered tap*c + ci, so that
    #    U2 = Wd @ [y; y>>1; y>>W; y>>(W+1)] directly yields parity-planar rows.
    wbig = build_deconv_matmul_weight(wt, c)
    return wbig.reshape(4, c, 4, c).transpose(3, 2, 0, 1).reshape(4 * c, 4 * c)


def _make_tap_masks(H, W, tcol):
    # Per-position border masks, periodic over whole images (tile = k * H*W):
    # row 0: right-neighbor valid, row 1: down-neighbor valid, row 2: both.
    hw = H * W
    p = jnp.arange(hw, dtype=jnp.int32)
    j = p % W
    i = p // W
    right = (j < W - 1).astype(jnp.float32)
    down = (i < H - 1).astype(jnp.float32)
    m = jnp.stack([right, down, right * down])              # (3, hw)
    return jnp.tile(m, (1, tcol // hw))                     # (3, tcol)


# ---------------------------------------------------------------------------
# DecoderBlock forward (Pallas path)
# ---------------------------------------------------------------------------
@functools.partial(jax.jit, static_argnames=("storage_dtype",))
def decoder_block_forward(params, x_nchw, *, storage_dtype=jnp.bfloat16):
    N, Cin, H, W = x_nchw.shape
    c4 = params["w1"].shape[0]
    nf = params["w3"].shape[0]
    HW = H * W
    M = N * HW

    # No boundary transpose: NCHW -> (N, Cin, HW) is a free reshape; K1's
    # (batch, column-tile) grid writes the channel-major slab directly.
    x3 = x_nchw.reshape(N, Cin, HW)

    # ---- stage 1: 1x1 conv + bias, BN1 stats accumulated in the same pass --------
    w1 = params["w1"][:, :, 0, 0]                               # (c4, Cin)
    b1 = params["b1"].reshape(c4, 1)
    t1 = _pick_cols_tile(HW, min_tiles=1 if N >= 2 else 2)      # per-image columns
    u1, s1 = conv1x1_with_stats(x3, w1, b1, t1, storage_dtype)  # (c4, M) slab
    sc1, sh1 = _bn_scale_shift(s1, t1, params["g1"], params["be1"])

    # ---- stage 2: BN1+ReLU prologue, ConvTranspose2d as subpixel matmul ----------
    w2 = build_deconv_weight_channel_major(params["wt2"], c4)   # (4c4, 4c4)
    b2 = jnp.repeat(params["b2"], 4).reshape(4 * c4, 1)         # rows co*4 + parity
    t2 = _pick_cols_tile_deconv(M, HW)
    masks = _make_tap_masks(H, W, t2)                           # (3, t2)
    u2, s2 = deconv_subpixel_with_stats(u1, sc1, sh1, masks, w2, b2, W, t2,
                                        storage_dtype)
    sc2, sh2 = _bn_scale_shift(s2, t2, params["g2"], params["be2"], fold=4)
    sc2b = jnp.repeat(sc2, 4, axis=0)                           # (4c4, 1)
    sh2b = jnp.repeat(sh2, 4, axis=0)

    # ---- stage 3: BN2+ReLU prologue, 1x1 conv, BN3+ReLU epilogue -----------------
    w3 = jnp.kron(params["w3"][:, :, 0, 0], jnp.eye(4, dtype=jnp.float32))  # (4nf,4c4)
    b3 = jnp.repeat(params["b3"], 4).reshape(4 * nf, 1)
    t3 = _pick_cols_tile(M)
    s3 = bn_matmul_stats(u2, sc2b, sh2b, w3, b3, t3)            # BN3 stats pre-pass
    sc3, sh3 = _bn_scale_shift(s3, t3, params["g3"], params["be3"], fold=4)
    sc3b = jnp.repeat(sc3, 4, axis=0)
    sh3b = jnp.repeat(sh3, 4, axis=0)
    w3f = w3 * sc3b                                             # fold BN3 into weights
    b3f = b3 * sc3b + sh3b
    y3 = bn_matmul_bn_relu(u2, sc2b, sh2b, w3f, b3f, t3)        # (4nf, M) f32

    # Single boundary transpose does BOTH the 2x2 pixel shuffle and the NCHW move.
    # TODO(synk): interleave the px parity inside K3b's epilogue (even/odd lane
    # swizzle) so this transpose becomes line-contiguous.
    out = (y3.reshape(nf, 2, 2, N, H, W)
              .transpose(3, 0, 4, 1, 5, 2)
              .reshape(N, nf, 2 * H, 2 * W))
    return out


# ---------------------------------------------------------------------------
# Pure-JAX reference (mirrors the PyTorch module, NCHW)
# ---------------------------------------------------------------------------
def reference_forward(params, x):
    def bn_relu_ref(y, g, b):
        mean = y.mean(axis=(0, 2, 3), keepdims=True)
        var = y.var(axis=(0, 2, 3), keepdims=True)
        yn = (y - mean) / jnp.sqrt(var + EPS)
        return jnp.maximum(yn * g[None, :, None, None] + b[None, :, None, None], 0.0)

    dn = ("NCHW", "OIHW", "NCHW")
    y = lax.conv_general_dilated(x, params["w1"], (1, 1), "VALID", dimension_numbers=dn)
    y = bn_relu_ref(y + params["b1"][None, :, None, None], params["g1"], params["be1"])

    w_flip = jnp.transpose(params["wt2"], (1, 0, 2, 3))[:, :, ::-1, ::-1]
    y = lax.conv_general_dilated(
        y, w_flip, (1, 1), ((1, 2), (1, 2)), lhs_dilation=(2, 2), dimension_numbers=dn
    )
    y = bn_relu_ref(y + params["b2"][None, :, None, None], params["g2"], params["be2"])

    y = lax.conv_general_dilated(y, params["w3"], (1, 1), "VALID", dimension_numbers=dn)
    y = bn_relu_ref(y + params["b3"][None, :, None, None], params["g3"], params["be3"])
    return y


# ---------------------------------------------------------------------------
def init_params(key, in_channels, n_filters):
    c4 = in_channels // 4
    ks = jax.random.split(key, 12)
    p = {}
    p["w1"] = 0.1 * jax.random.normal(ks[0], (c4, in_channels, 1, 1), jnp.float32)
    p["b1"] = 0.1 * jax.random.normal(ks[1], (c4,), jnp.float32)
    p["g1"] = 1.0 + 0.1 * jax.random.normal(ks[2], (c4,), jnp.float32)
    p["be1"] = 0.1 * jax.random.normal(ks[3], (c4,), jnp.float32)
    p["wt2"] = 0.1 * jax.random.normal(ks[4], (c4, c4, 3, 3), jnp.float32)  # (in,out,kh,kw)
    p["b2"] = 0.1 * jax.random.normal(ks[5], (c4,), jnp.float32)
    p["g2"] = 1.0 + 0.1 * jax.random.normal(ks[6], (c4,), jnp.float32)
    p["be2"] = 0.1 * jax.random.normal(ks[7], (c4,), jnp.float32)
    p["w3"] = 0.1 * jax.random.normal(ks[8], (n_filters, c4, 1, 1), jnp.float32)
    p["b3"] = 0.1 * jax.random.normal(ks[9], (n_filters,), jnp.float32)
    p["g3"] = 1.0 + 0.1 * jax.random.normal(ks[10], (n_filters,), jnp.float32)
    p["be3"] = 0.1 * jax.random.normal(ks[11], (n_filters,), jnp.float32)
    return p


if __name__ == "__main__":
    in_channels, n_filters = 16, 8
    N, H, W = 2, 16, 16

    key = jax.random.PRNGKey(0)
    pkey, xkey = jax.random.split(key)
    params = init_params(pkey, in_channels, n_filters)
    x = jax.random.normal(xkey, (N, in_channels, H, W), jnp.float32)

    ref = jax.block_until_ready(reference_forward(params, x))

    # Strict check: f32 intermediate storage.
    out_f32 = jax.block_until_ready(
        decoder_block_forward(params, x, storage_dtype=jnp.float32))
    assert out_f32.shape == (N, n_filters, 2 * H, 2 * W), out_f32.shape
    err_f32 = float(jnp.abs(out_f32 - ref).max())
    assert jnp.allclose(out_f32, ref, rtol=5e-4, atol=5e-4), err_f32

    # Default perf path: bf16 intermediate slabs (looser, bf16-appropriate tolerance).
    out_bf16 = jax.block_until_ready(
        decoder_block_forward(params, x, storage_dtype=jnp.bfloat16))
    err_bf16 = float(jnp.abs(out_bf16 - ref).max())
    assert jnp.allclose(out_bf16, ref, rtol=5e-2, atol=5e-2), err_bf16

    print("KERNEL_OK")
</pallas_src>

<mosaic_0001>
module attributes {stable_mosaic.version = 11 : i64} {
  func.func @_deconv_kernel(%arg0: i32, %arg1: memref<4x256xf32, #tpu.memory_space<vmem>>, %arg2: memref<4x1xf32, #tpu.memory_space<vmem>>, %arg3: memref<4x1xf32, #tpu.memory_space<vmem>>, %arg4: memref<3x256xf32, #tpu.memory_space<vmem>>, %arg5: memref<16x16xf32, #tpu.memory_space<vmem>>, %arg6: memref<16x1xf32, #tpu.memory_space<vmem>>, %arg7: memref<16x256xf32, #tpu.memory_space<vmem>>, %arg8: memref<1x16x2xf32, #tpu.memory_space<vmem>>) attributes {dimension_semantics = [#tpu.dimension_semantics<parallel>], iteration_bounds = array<i64: 2>, scalar_prefetch = 0 : i64, scratch_operands = 0 : i64, tpu.core_type = #tpu.core_type<tc>, window_params = [{transform_indices = @transform_0, window_bounds = array<i64: 4, 256>}, {pipeline_mode = #tpu.pipeline_mode<synchronous>, transform_indices = @transform_1, window_bounds = array<i64: 4, 1>}, {pipeline_mode = #tpu.pipeline_mode<synchronous>, transform_indices = @transform_2, window_bounds = array<i64: 4, 1>}, {pipeline_mode = #tpu.pipeline_mode<synchronous>, transform_indices = @transform_3, window_bounds = array<i64: 3, 256>}, {pipeline_mode = #tpu.pipeline_mode<synchronous>, transform_indices = @transform_4, window_bounds = array<i64: 16, 16>}, {pipeline_mode = #tpu.pipeline_mode<synchronous>, transform_indices = @transform_5, window_bounds = array<i64: 16, 1>}, {transform_indices = @transform_6, window_bounds = array<i64: 16, 256>}, {transform_indices = @transform_7, window_bounds = array<i64: 1, 16, 2>}]} {
    %c0 = arith.constant 0 : index
    %c0_0 = arith.constant 0 : index
    %0 = vector.load %arg1[%c0, %c0_0] : memref<4x256xf32, #tpu.memory_space<vmem>>, vector<4x256xf32>
    %c0_1 = arith.constant 0 : index
    %c0_2 = arith.constant 0 : index
    %1 = vector.load %arg2[%c0_1, %c0_2] : memref<4x1xf32, #tpu.memory_space<vmem>>, vector<4x1xf32>
    %2 = vector.broadcast %1 : vector<4x1xf32> to vector<4x256xf32>
    %3 = arith.mulf %0, %2 : vector<4x256xf32>
    %c0_3 = arith.constant 0 : index
    %c0_4 = arith.constant 0 : index
    %4 = vector.load %arg3[%c0_3, %c0_4] : memref<4x1xf32, #tpu.memory_space<vmem>>, vector<4x1xf32>
    %5 = vector.broadcast %4 : vector<4x1xf32> to vector<4x256xf32>
    %6 = arith.addf %3, %5 : vector<4x256xf32>
    %cst = arith.constant 0.000000e+00 : f32
    %7 = vector.broadcast %cst : f32 to vector<4x256xf32>
    %8 = arith.maximumf %6, %7 : vector<4x256xf32>
    %c0_5 = arith.constant 0 : index
    %c0_6 = arith.constant 0 : index
    %9 = vector.load %arg4[%c0_5, %c0_6] : memref<3x256xf32, #tpu.memory_space<vmem>>, vector<3x256xf32>
    %10 = vector.extract_strided_slice %9 {offsets = [0, 0], sizes = [1, 256], strides = [1, 1]} : vector<3x256xf32> to vector<1x256xf32>
    %11 = vector.extract_strided_slice %9 {offsets = [1, 0], sizes = [1, 256], strides = [1, 1]} : vector<3x256xf32> to vector<1x256xf32>
    %12 = vector.extract_strided_slice %9 {offsets = [2, 0], sizes = [1, 256], strides = [1, 1]} : vector<3x256xf32> to vector<1x256xf32>
    %c255_i32 = arith.constant 255 : i32
    %13 = tpu.dynamic_rotate %8 by %c255_i32 dim 1 : vector<4x256xf32>, i32 -> vector<4x256xf32>
    %14 = vector.broadcast %10 : vector<1x256xf32> to vector<4x256xf32>
    %15 = arith.mulf %13, %14 : vector<4x256xf32>
    %c240_i32 = arith.constant 240 : i32
    %16 = tpu.dynamic_rotate %8 by %c240_i32 dim 1 : vector<4x256xf32>, i32 -> vector<4x256xf32>
    %17 = vector.broadcast %11 : vector<1x256xf32> to vector<4x256xf32>
    %18 = arith.mulf %16, %17 : vector<4x256xf32>
    %c239_i32 = arith.constant 239 : i32
    %19 = tpu.dynamic_rotate %8 by %c239_i32 dim 1 : vector<4x256xf32>, i32 -> vector<4x256xf32>
    %20 = vector.broadcast %12 : vector<1x256xf32> to vector<4x256xf32>
    %21 = arith.mulf %19, %20 : vector<4x256xf32>
    %22 = tpu.concatenate %8, %15, %18, %21 in 0 : vector<4x256xf32>, vector<4x256xf32>, vector<4x256xf32>, vector<4x256xf32> -> vector<16x256xf32>
    %c0_7 = arith.constant 0 : index
    %c0_8 = arith.constant 0 : index
    %23 = vector.load %arg5[%c0_7, %c0_8] : memref<16x16xf32, #tpu.memory_space<vmem>>, vector<16x16xf32>
    %cst_9 = arith.constant dense<0.000000e+00> : vector<16x256xf32>
    %24 = tpu.matmul %23, %22, %cst_9 {dimension_numbers = #tpu.dot_dimension_numbers<[1], [0], [0], [1], [0, 0, 1, 1], [], []>} : vector<16x16xf32>, vector<16x256xf32>, vector<16x256xf32> -> vector<16x256xf32>
    %c0_10 = arith.constant 0 : index
    %c0_11 = arith.constant 0 : index
    %25 = vector.load %arg6[%c0_10, %c0_11] : memref<16x1xf32, #tpu.memory_space<vmem>>, vector<16x1xf32>
    %26 = vector.broadcast %25 : vector<16x1xf32> to vector<16x256xf32>
    %27 = arith.addf %24, %26 : vector<16x256xf32>
    %c0_12 = arith.constant 0 : index
    %c0_13 = arith.constant 0 : index
    %28 = vector.load %arg7[%c0_12, %c0_13] : memref<16x256xf32, #tpu.memory_space<vmem>>, vector<16x256xf32>
    tpu.vector_store %arg7[%c0_12, %c0_13], %27 {strides = array<i32>} : memref<16x256xf32, #tpu.memory_space<vmem>>, vector<16x256xf32>,
    %cst_14 = arith.constant dense<0.000000e+00> : vector<16xf32>
    %29 = vector.multi_reduction <add>, %27, %cst_14 [1] : vector<16x256xf32> to vector<16xf32>
    %30 = vector.shape_cast %29 : vector<16xf32> to vector<16x1xf32>
    %cst_15 = arith.constant 3.906250e-03 : f32
    %31 = vector.broadcast %cst_15 : f32 to vector<16x1xf32>
    %32 = arith.mulf %30, %31 : vector<16x1xf32>
    %33 = vector.broadcast %32 : vector<16x1xf32> to vector<16x256xf32>
    %34 = arith.subf %27, %33 : vector<16x256xf32>
    %35 = arith.mulf %34, %34 : vector<16x256xf32>
    %cst_16 = arith.constant dense<0.000000e+00> : vector<16xf32>
    %36 = vector.multi_reduction <add>, %35, %cst_16 [1] : vector<16x256xf32> to vector<16xf32>
    %37 = vector.shape_cast %36 : vector<16xf32> to vector<16x1xf32>
    %38 = tpu.concatenate %30, %37 in 1 : vector<16x1xf32>, vector<16x1xf32> -> vector<16x2xf32>
    %c0_17 = arith.constant 0 : index
    %c0_18 = arith.constant 0 : index
    %c0_19 = arith.constant 0 : index
    %39 = vector.load %arg8[%c0_17, %c0_18, %c0_19] : memref<1x16x2xf32, #tpu.memory_space<vmem>>, vector<1x16x2xf32>
    %40 = vector.shape_cast %39 : vector<1x16x2xf32> to vector<16x2xf32>
    %41 = vector.shape_cast %38 : vector<16x2xf32> to vector<1x16x2xf32>
    tpu.vector_store %arg8[%c0_17, %c0_18, %c0_19], %41 {strides = array<i32>} : memref<1x16x2xf32, #tpu.memory_space<vmem>>, vector<1x16x2xf32>,
    return
  }
  func.func @transform_0(%arg0: i32) -> (i32, i32) {
    %c0_i32 = arith.constant 0 : i32
    %c0_i32_0 = arith.constant 0 : i32
    return %c0_i32, %arg0 : i32, i32
  }
  func.func @transform_1(%arg0: i32) -> (i32, i32) {
    %c0_i32 = arith.constant 0 : i32
    %c0_i32_0 = arith.constant 0 : i32
    %c0_i32_1 = arith.constant 0 : i32
    return %c0_i32, %c0_i32_0 : i32, i32
  }
  func.func @transform_2(%arg0: i32) -> (i32, i32) {
    %c0_i32 = arith.constant 0 : i32
    %c0_i32_0 = arith.constant 0 : i32
    %c0_i32_1 = arith.constant 0 : i32
    return %c0_i32, %c0_i32_0 : i32, i32
  }
  func.func @transform_3(%arg0: i32) -> (i32, i32) {
    %c0_i32 = arith.constant 0 : i32
    %c0_i32_0 = arith.constant 0 : i32
    %c0_i32_1 = arith.constant 0 : i32
    return %c0_i32, %c0_i32_0 : i32, i32
  }
  func.func @transform_4(%arg0: i32) -> (i32, i32) {
    %c0_i32 = arith.constant 0 : i32
    %c0_i32_0 = arith.constant 0 : i32
    %c0_i32_1 = arith.constant 0 : i32
    return %c0_i32, %c0_i32_0 : i32, i32
  }
  func.func @transform_5(%arg0: i32) -> (i32, i32) {
    %c0_i32 = arith.constant 0 : i32
    %c0_i32_0 = arith.constant 0 : i32
    %c0_i32_1 = arith.constant 0 : i32
    return %c0_i32, %c0_i32_0 : i32, i32
  }
  func.func @transform_6(%arg0: i32) -> (i32, i32) {
    %c0_i32 = arith.constant 0 : i32
    %c0_i32_0 = arith.constant 0 : i32
    return %c0_i32, %arg0 : i32, i32
  }
  func.func @transform_7(%arg0: i32) -> (i32, i32, i32) {
    %c0_i32 = arith.constant 0 : i32
    %c0_i32_0 = arith.constant 0 : i32
    %c0_i32_1 = arith.constant 0 : i32
    return %arg0, %c0_i32, %c0_i32_0 : i32, i32, i32
  }
}

module attributes {stable_mosaic.version = 11 : i64} {
  func.func @_conv1x1_stats_kernel(%arg0: i32, %arg1: i32, %arg2: memref<1x16x256xf32, #tpu.memory_space<vmem>>, %arg3: memref<4x16xf32, #tpu.memory_space<vmem>>, %arg4: memref<4x1xf32, #tpu.memory_space<vmem>>, %arg5: memref<4x256xf32, #tpu.memory_space<vmem>>, %arg6: memref<1x4x2xf32, #tpu.memory_space<vmem>>) attributes {dimension_semantics = [#tpu.dimension_semantics<parallel>, #tpu.dimension_semantics<parallel>], iteration_bounds = array<i64: 2, 1>, scalar_prefetch = 0 : i64, scratch_operands = 0 : i64, tpu.core_type = #tpu.core_type<tc>, window_params = [{transform_indices = @transform_0, window_bounds = array<i64: 1, 16, 256>}, {pipeline_mode = #tpu.pipeline_mode<synchronous>, transform_indices = @transform_1, window_bounds = array<i64: 4, 16>}, {pipeline_mode = #tpu.pipeline_mode<synchronous>, transform_indices = @transform_2, window_bounds = array<i64: 4, 1>}, {transform_indices = @transform_3, window_bounds = array<i64: 4, 256>}, {transform_indices = @transform_4, window_bounds = array<i64: 1, 4, 2>}]} {
    %c0 = arith.constant 0 : index
    %c0_0 = arith.constant 0 : index
    %c0_1 = arith.constant 0 : index
    %0 = vector.load %arg2[%c0, %c0_0, %c0_1] : memref<1x16x256xf32, #tpu.memory_space<vmem>>, vector<1x16x256xf32>
    %1 = vector.shape_cast %0 : vector<1x16x256xf32> to vector<16x256xf32>
    %c0_2 = arith.constant 0 : index
    %c0_3 = arith.constant 0 : index
    %2 = vector.load %arg3[%c0_2, %c0_3] : memref<4x16xf32, #tpu.memory_space<vmem>>, vector<4x16xf32>
    %cst = arith.constant dense<0.000000e+00> : vector<4x256xf32>
    %3 = tpu.matmul %2, %1, %cst {dimension_numbers = #tpu.dot_dimension_numbers<[1], [0], [0], [1], [0, 0, 1, 1], [], []>} : vector<4x16xf32>, vector<16x256xf32>, vector<4x256xf32> -> vector<4x256xf32>
    %c0_4 = arith.constant 0 : index
    %c0_5 = arith.constant 0 : index
    %4 = vector.load %arg4[%c0_4, %c0_5] : memref<4x1xf32, #tpu.memory_space<vmem>>, vector<4x1xf32>
    %5 = vector.broadcast %4 : vector<4x1xf32> to vector<4x256xf32>
    %6 = arith.addf %3, %5 : vector<4x256xf32>
    %c0_6 = arith.constant 0 : index
    %c0_7 = arith.constant 0 : index
    %7 = vector.load %arg5[%c0_6, %c0_7] : memref<4x256xf32, #tpu.memory_space<vmem>>, vector<4x256xf32>
    tpu.vector_store %arg5[%c0_6, %c0_7], %6 {strides = array<i32>} : memref<4x256xf32, #tpu.memory_space<vmem>>, vector<4x256xf32>,
    %cst_8 = arith.constant dense<0.000000e+00> : vector<4xf32>
    %8 = vector.multi_reduction <add>, %6, %cst_8 [1] : vector<4x256xf32> to vector<4xf32>
    %9 = vector.shape_cast %8 : vector<4xf32> to vector<4x1xf32>
    %cst_9 = arith.constant 3.906250e-03 : f32
    %10 = vector.broadcast %cst_9 : f32 to vector<4x1xf32>
    %11 = arith.mulf %9, %10 : vector<4x1xf32>
    %12 = vector.broadcast %11 : vector<4x1xf32> to vector<4x256xf32>
    %13 = arith.subf %6, %12 : vector<4x256xf32>
    %14 = arith.mulf %13, %13 : vector<4x256xf32>
    %cst_10 = arith.constant dense<0.000000e+00> : vector<4xf32>
    %15 = vector.multi_reduction <add>, %14, %cst_10 [1] : vector<4x256xf32> to vector<4xf32>
    %16 = vector.shape_cast %15 : vector<4xf32> to vector<4x1xf32>
    %17 = tpu.concatenate %9, %16 in 1 : vector<4x1xf32>, vector<4x1xf32> -> vector<4x2xf32>
    %c0_11 = arith.constant 0 : index
    %c0_12 = arith.constant 0 : index
    %c0_13 = arith.constant 0 : index
    %18 = vector.load %arg6[%c0_11, %c0_12, %c0_13] : memref<1x4x2xf32, #tpu.memory_space<vmem>>, vector<1x4x2xf32>
    %19 = vector.shape_cast %18 : vector<1x4x2xf32> to vector<4x2xf32>
    %20 = vector.shape_cast %17 : vector<4x2xf32> to vector<1x4x2xf32>
    tpu.vector_store %arg6[%c0_11, %c0_12, %c0_13], %20 {strides = array<i32>} : memref<1x4x2xf32, #tpu.memory_space<vmem>>, vector<1x4x2xf32>,
    return
  }
  func.func @transform_0(%arg0: i32, %arg1: i32) -> (i32, i32, i32) {
    %c0_i32 = arith.constant 0 : i32
    %c0_i32_0 = arith.constant 0 : i32
    return %arg0, %c0_i32, %arg1 : i32, i32, i32
  }
  func.func @transform_1(%arg0: i32, %arg1: i32) -> (i32, i32) {
    %c0_i32 = arith.constant 0 : i32
    %c0_i32_0 = arith.constant 0 : i32
    %c0_i32_1 = arith.constant 0 : i32
    return %c0_i32, %c0_i32_0 : i32, i32
  }
  func.func @transform_2(%arg0: i32, %arg1: i32) -> (i32, i32) {
    %c0_i32 = arith.constant 0 : i32
    %c0_i32_0 = arith.constant 0 : i32
    %c0_i32_1 = arith.constant 0 : i32
    return %c0_i32, %c0_i32_0 : i32, i32
  }
  func.func @transform_3(%arg0: i32, %arg1: i32) -> (i32, i32) {
    %c1_i32 = arith.constant 1 : i32
    %0 = arith.muli %arg0, %c1_i32 : i32
    %1 = arith.addi %0, %arg1 : i32
    %c0_i32 = arith.constant 0 : i32
    %c0_i32_0 = arith.constant 0 : i32
    return %c0_i32, %1 : i32, i32
  }
  func.func @transform_4(%arg0: i32, %arg1: i32) -> (i32, i32, i32) {
    %c1_i32 = arith.constant 1 : i32
    %0 = arith.muli %arg0, %c1_i32 : i32
    %1 = arith.addi %0, %arg1 : i32
    %c0_i32 = arith.constant 0 : i32
    %c0_i32_0 = arith.constant 0 : i32
    %c0_i32_1 = arith.constant 0 : i32
    return %1, %c0_i32, %c0_i32_0 : i32, i32, i32
  }
}

module attributes {stable_mosaic.version = 11 : i64} {
  func.func @_bn_matmul_stats_kernel(%arg0: i32, %arg1: memref<16x256xf32, #tpu.memory_space<vmem>>, %arg2: memref<16x1xf32, #tpu.memory_space<vmem>>, %arg3: memref<16x1xf32, #tpu.memory_space<vmem>>, %arg4: memref<32x16xf32, #tpu.memory_space<vmem>>, %arg5: memref<32x1xf32, #tpu.memory_space<vmem>>, %arg6: memref<1x32x2xf32, #tpu.memory_space<vmem>>) attributes {dimension_semantics = [#tpu.dimension_semantics<parallel>], iteration_bounds = array<i64: 2>, scalar_prefetch = 0 : i64, scratch_operands = 0 : i64, tpu.core_type = #tpu.core_type<tc>, window_params = [{transform_indices = @transform_0, window_bounds = array<i64: 16, 256>}, {pipeline_mode = #tpu.pipeline_mode<synchronous>, transform_indices = @transform_1, window_bounds = array<i64: 16, 1>}, {pipeline_mode = #tpu.pipeline_mode<synchronous>, transform_indices = @transform_2, window_bounds = array<i64: 16, 1>}, {pipeline_mode = #tpu.pipeline_mode<synchronous>, transform_indices = @transform_3, window_bounds = array<i64: 32, 16>}, {pipeline_mode = #tpu.pipeline_mode<synchronous>, transform_indices = @transform_4, window_bounds = array<i64: 32, 1>}, {transform_indices = @transform_5, window_bounds = array<i64: 1, 32, 2>}]} {
    %c0 = arith.constant 0 : index
    %c0_0 = arith.constant 0 : index
    %0 = vector.load %arg1[%c0, %c0_0] : memref<16x256xf32, #tpu.memory_space<vmem>>, vector<16x256xf32>
    %c0_1 = arith.constant 0 : index
    %c0_2 = arith.constant 0 : index
    %1 = vector.load %arg2[%c0_1, %c0_2] : memref<16x1xf32, #tpu.memory_space<vmem>>, vector<16x1xf32>
    %2 = vector.broadcast %1 : vector<16x1xf32> to vector<16x256xf32>
    %3 = arith.mulf %0, %2 : vector<16x256xf32>
    %c0_3 = arith.constant 0 : index
    %c0_4 = arith.constant 0 : index
    %4 = vector.load %arg3[%c0_3, %c0_4] : memref<16x1xf32, #tpu.memory_space<vmem>>, vector<16x1xf32>
    %5 = vector.broadcast %4 : vector<16x1xf32> to vector<16x256xf32>
    %6 = arith.addf %3, %5 : vector<16x256xf32>
    %cst = arith.constant 0.000000e+00 : f32
    %7 = vector.broadcast %cst : f32 to vector<16x256xf32>
    %8 = arith.maximumf %6, %7 : vector<16x256xf32>
    %c0_5 = arith.constant 0 : index
    %c0_6 = arith.constant 0 : index
    %9 = vector.load %arg4[%c0_5, %c0_6] : memref<32x16xf32, #tpu.memory_space<vmem>>, vector<32x16xf32>
    %cst_7 = arith.constant dense<0.000000e+00> : vector<32x256xf32>
    %10 = tpu.matmul %9, %8, %cst_7 {dimension_numbers = #tpu.dot_dimension_numbers<[1], [0], [0], [1], [0, 0, 1, 1], [], []>} : vector<32x16xf32>, vector<16x256xf32>, vector<32x256xf32> -> vector<32x256xf32>
    %c0_8 = arith.constant 0 : index
    %c0_9 = arith.constant 0 : index
    %11 = vector.load %arg5[%c0_8, %c0_9] : memref<32x1xf32, #tpu.memory_space<vmem>>, vector<32x1xf32>
    %12 = vector.broadcast %11 : vector<32x1xf32> to vector<32x256xf32>
    %13 = arith.addf %10, %12 : vector<32x256xf32>
    %cst_10 = arith.constant dense<0.000000e+00> : vector<32xf32>
    %14 = vector.multi_reduction <add>, %13, %cst_10 [1] : vector<32x256xf32> to vector<32xf32>
    %15 = vector.shape_cast %14 : vector<32xf32> to vector<32x1xf32>
    %cst_11 = arith.constant 3.906250e-03 : f32
    %16 = vector.broadcast %cst_11 : f32 to vector<32x1xf32>
    %17 = arith.mulf %15, %16 : vector<32x1xf32>
    %18 = vector.broadcast %17 : vector<32x1xf32> to vector<32x256xf32>
    %19 = arith.subf %13, %18 : vector<32x256xf32>
    %20 = arith.mulf %19, %19 : vector<32x256xf32>
    %cst_12 = arith.constant dense<0.000000e+00> : vector<32xf32>
    %21 = vector.multi_reduction <add>, %20, %cst_12 [1] : vector<32x256xf32> to vector<32xf32>
    %22 = vector.shape_cast %21 : vector<32xf32> to vector<32x1xf32>
    %23 = tpu.concatenate %15, %22 in 1 : vector<32x1xf32>, vector<32x1xf32> -> vector<32x2xf32>
    %c0_13 = arith.constant 0 : index
    %c0_14 = arith.constant 0 : index
    %c0_15 = arith.constant 0 : index
    %24 = vector.load %arg6[%c0_13, %c0_14, %c0_15] : memref<1x32x2xf32, #tpu.memory_space<vmem>>, vector<1x32x2xf32>
    %25 = vector.shape_cast %24 : vector<1x32x2xf32> to vector<32x2xf32>
    %26 = vector.shape_cast %23 : vector<32x2xf32> to vector<1x32x2xf32>
    tpu.vector_store %arg6[%c0_13, %c0_14, %c0_15], %26 {strides = array<i32>} : memref<1x32x2xf32, #tpu.memory_space<vmem>>, vector<1x32x2xf32>,
    return
  }
  func.func @transform_0(%arg0: i32) -> (i32, i32) {
    %c0_i32 = arith.constant 0 : i32
    %c0_i32_0 = arith.constant 0 : i32
    return %c0_i32, %arg0 : i32, i32
  }
  func.func @transform_1(%arg0: i32) -> (i32, i32) {
    %c0_i32 = arith.constant 0 : i32
    %c0_i32_0 = arith.constant 0 : i32
    %c0_i32_1 = arith.constant 0 : i32
    return %c0_i32, %c0_i32_0 : i32, i32
  }
  func.func @transform_2(%arg0: i32) -> (i32, i32) {
    %c0_i32 = arith.constant 0 : i32
    %c0_i32_0 = arith.constant 0 : i32
    %c0_i32_1 = arith.constant 0 : i32
    return %c0_i32, %c0_i32_0 : i32, i32
  }
  func.func @transform_3(%arg0: i32) -> (i32, i32) {
    %c0_i32 = arith.constant 0 : i32
    %c0_i32_0 = arith.constant 0 : i32
    %c0_i32_1 = arith.constant 0 : i32
    return %c0_i32, %c0_i32_0 : i32, i32
  }
  func.func @transform_4(%arg0: i32) -> (i32, i32) {
    %c0_i32 = arith.constant 0 : i32
    %c0_i32_0 = arith.constant 0 : i32
    %c0_i32_1 = arith.constant 0 : i32
    return %c0_i32, %c0_i32_0 : i32, i32
  }
  func.func @transform_5(%arg0: i32) -> (i32, i32, i32) {
    %c0_i32 = arith.constant 0 : i32
    %c0_i32_0 = arith.constant 0 : i32
    %c0_i32_1 = arith.constant 0 : i32
    return %arg0, %c0_i32, %c0_i32_0 : i32, i32, i32
  }
}

module attributes {stable_mosaic.version = 11 : i64} {
  func.func @_bn_matmul_relu_kernel(%arg0: i32, %arg1: memref<16x256xf32, #tpu.memory_space<vmem>>, %arg2: memref<16x1xf32, #tpu.memory_space<vmem>>, %arg3: memref<16x1xf32, #tpu.memory_space<vmem>>, %arg4: memref<32x16xf32, #tpu.memory_space<vmem>>, %arg5: memref<32x1xf32, #tpu.memory_space<vmem>>, %arg6: memref<32x256xf32, #tpu.memory_space<vmem>>) attributes {dimension_semantics = [#tpu.dimension_semantics<parallel>], iteration_bounds = array<i64: 2>, scalar_prefetch = 0 : i64, scratch_operands = 0 : i64, tpu.core_type = #tpu.core_type<tc>, window_params = [{transform_indices = @transform_0, window_bounds = array<i64: 16, 256>}, {pipeline_mode = #tpu.pipeline_mode<synchronous>, transform_indices = @transform_1, window_bounds = array<i64: 16, 1>}, {pipeline_mode = #tpu.pipeline_mode<synchronous>, transform_indices = @transform_2, window_bounds = array<i64: 16, 1>}, {pipeline_mode = #tpu.pipeline_mode<synchronous>, transform_indices = @transform_3, window_bounds = array<i64: 32, 16>}, {pipeline_mode = #tpu.pipeline_mode<synchronous>, transform_indices = @transform_4, window_bounds = array<i64: 32, 1>}, {transform_indices = @transform_5, window_bounds = array<i64: 32, 256>}]} {
    %c0 = arith.constant 0 : index
    %c0_0 = arith.constant 0 : index
    %0 = vector.load %arg1[%c0, %c0_0] : memref<16x256xf32, #tpu.memory_space<vmem>>, vector<16x256xf32>
    %c0_1 = arith.constant 0 : index
    %c0_2 = arith.constant 0 : index
    %1 = vector.load %arg2[%c0_1, %c0_2] : memref<16x1xf32, #tpu.memory_space<vmem>>, vector<16x1xf32>
    %2 = vector.broadcast %1 : vector<16x1xf32> to vector<16x256xf32>
    %3 = arith.mulf %0, %2 : vector<16x256xf32>
    %c0_3 = arith.constant 0 : index
    %c0_4 = arith.constant 0 : index
    %4 = vector.load %arg3[%c0_3, %c0_4] : memref<16x1xf32, #tpu.memory_space<vmem>>, vector<16x1xf32>
    %5 = vector.broadcast %4 : vector<16x1xf32> to vector<16x256xf32>
    %6 = arith.addf %3, %5 : vector<16x256xf32>
    %cst = arith.constant 0.000000e+00 : f32
    %7 = vector.broadcast %cst : f32 to vector<16x256xf32>
    %8 = arith.maximumf %6, %7 : vector<16x256xf32>
    %c0_5 = arith.constant 0 : index
    %c0_6 = arith.constant 0 : index
    %9 = vector.load %arg4[%c0_5, %c0_6] : memref<32x16xf32, #tpu.memory_space<vmem>>, vector<32x16xf32>
    %cst_7 = arith.constant dense<0.000000e+00> : vector<32x256xf32>
    %10 = tpu.matmul %9, %8, %cst_7 {dimension_numbers = #tpu.dot_dimension_numbers<[1], [0], [0], [1], [0, 0, 1, 1], [], []>} : vector<32x16xf32>, vector<16x256xf32>, vector<32x256xf32> -> vector<32x256xf32>
    %c0_8 = arith.constant 0 : index
    %c0_9 = arith.constant 0 : index
    %11 = vector.load %arg5[%c0_8, %c0_9] : memref<32x1xf32, #tpu.memory_space<vmem>>, vector<32x1xf32>
    %12 = vector.broadcast %11 : vector<32x1xf32> to vector<32x256xf32>
    %13 = arith.addf %10, %12 : vector<32x256xf32>
    %cst_10 = arith.constant 0.000000e+00 : f32
    %14 = vector.broadcast %cst_10 : f32 to vector<32x256xf32>
    %15 = arith.maximumf %13, %14 : vector<32x256xf32>
    %c0_11 = arith.constant 0 : index
    %c0_12 = arith.constant 0 : index
    %16 = vector.load %arg6[%c0_11, %c0_12] : memref<32x256xf32, #tpu.memory_space<vmem>>, vector<32x256xf32>
    tpu.vector_store %arg6[%c0_11, %c0_12], %15 {strides = array<i32>} : memref<32x256xf32, #tpu.memory_space<vmem>>, vector<32x256xf32>,
    return
  }
  func.func @transform_0(%arg0: i32) -> (i32, i32) {
    %c0_i32 = arith.constant 0 : i32
    %c0_i32_0 = arith.constant 0 : i32
    return %c0_i32, %arg0 : i32, i32
  }
  func.func @transform_1(%arg0: i32) -> (i32, i32) {
    %c0_i32 = arith.constant 0 : i32
    %c0_i32_0 = arith.constant 0 : i32
    %c0_i32_1 = arith.constant 0 : i32
    return %c0_i32, %c0_i32_0 : i32, i32
  }
  func.func @transform_2(%arg0: i32) -> (i32, i32) {
    %c0_i32 = arith.constant 0 : i32
    %c0_i32_0 = arith.constant 0 : i32
    %c0_i32_1 = arith.constant 0 : i32
    return %c0_i32, %c0_i32_0 : i32, i32
  }
  func.func @transform_3(%arg0: i32) -> (i32, i32) {
    %c0_i32 = arith.constant 0 : i32
    %c0_i32_0 = arith.constant 0 : i32
    %c0_i32_1 = arith.constant 0 : i32
    return %c0_i32, %c0_i32_0 : i32, i32
  }
  func.func @transform_4(%arg0: i32) -> (i32, i32) {
    %c0_i32 = arith.constant 0 : i32
    %c0_i32_0 = arith.constant 0 : i32
    %c0_i32_1 = arith.constant 0 : i32
    return %c0_i32, %c0_i32_0 : i32, i32
  }
  func.func @transform_5(%arg0: i32) -> (i32, i32) {
    %c0_i32 = arith.constant 0 : i32
    %c0_i32_0 = arith.constant 0 : i32
    return %c0_i32, %arg0 : i32, i32
  }
}

</mosaic_0001>

<llo_original>
// kernel: decoder_block_forward.5
$region0: #{decoder_block_forward.5}
  #allocation0 [shape = 'u32[]', space=smem, size = 0x4, offset = 0x4, fixed_abs, tag = 'smem constant byte address 0x4 - core index']
  #allocation1 [shape = 'u32[144,128]{1,0:T(1,128)}', space=vmem, size = 0x12000, scoped, tag = 'internal scratch']
  %s0 = inlined_call_operand.vmem [shape: f32[4,512], index: 0, kind: input, shape index: {}]
  %s1 = inlined_call_operand.vmem [shape: f32[4,1], index: 1, kind: input, shape index: {}]
  %s2 = inlined_call_operand.vmem [shape: f32[4,1], index: 2, kind: input, shape index: {}]
  %s3 = inlined_call_operand.vmem [shape: f32[3,256], index: 3, kind: input, shape index: {}]
  %s4 = inlined_call_operand.vmem [shape: f32[16,16], index: 4, kind: input, shape index: {}]
  %s5 = inlined_call_operand.vmem [shape: f32[16,1], index: 5, kind: input, shape index: {}]
  %s6 = inlined_call_operand.vmem [shape: f32[16,512], index: 6, kind: output, shape index: {0}]
  %s7 = inlined_call_operand.vmem [shape: f32[2,16,2], index: 7, kind: output, shape index: {1}]
  %8 = xla_tuple %s6, %s7
  %s9 = sld [smem:[#allocation0]]
  $region84: #{decoder_block_forward.5} parent=0
    _
  %s11 = ssub.s32 1, %s9
  %s12 = scalar_select 0, %s11, %s9
  $region1: #{decoder_block_forward.5} parent=0
    #allocation2 [shape = 'u8[32768]{0}', space=vmem, size = 0x8000, scoped, tag = 'output window, operand 0']
    loop: start=0, step=1, limit=4
    $region2: #{decoder_block_forward.5} parent=1 // loop_pre_header
      _
    $region3: #{decoder_block_forward.5} parent=1 // loop_header
      %s14 = sphi 0, %s18
      %p15 = scmp.ge.s32.totalorder %s14, 4
      %s24 = sphi 0, %s26
      %s27 = sphi 0, %s24
      %s28 = sphi 0, %s27
      %s44 = sphi 0, %s28
      %s48 = sphi 0, %s48
      %s50 = sphi 0, %s48
      %s51 = sphi 0, %s50
      %s65 = sphi 0, %s51
      %s69 = sphi 0, %s69
      %s71 = sphi 0, %s69
      %s72 = sphi 0, %s71
      %s86 = sphi 0, %s72
      %s90 = sphi 0, %s90
      %s92 = sphi 0, %s90
      %s93 = sphi 0, %s92
      %s107 = sphi 0, %s93
      %s111 = sphi 0, %s111
      %s113 = sphi 0, %s111
      %s114 = sphi 0, %s113
      %s128 = sphi 0, %s114
      %s132 = sphi 0, %s132
      %s134 = sphi 0, %s132
      %s135 = sphi 0, %s134
      %s149 = sphi 0, %s135
      %s155 = sphi 0, %s157
      %s158 = sphi 0, %s155
      %s159 = sphi 0, %s158
      %s175 = sphi 0, %s159
      %s181 = sphi 0, %s183
      %s184 = sphi 0, %s181
      %s185 = sphi 0, %s184
      %s201 = sphi 0, %s185
    $region4: #{decoder_block_forward.5} parent=1 // loop_header_branch
      %17 = sbr.rel (%p15) target = $region8
    $region5: #{decoder_block_forward.5} parent=1 // loop_body
      %s19 = ssub.s32 %s14, 1
      %s20 = ssub.s32 %s14, 2
      %s21 = sadd.s32 %s14, 1
      %s22 = ssub.s32 %s14, %s21
      %p23 = scmp.eq.s32.totalorder %s22, 0
      %s25 = sadd.s32 %s24, 1
      %s26 = scalar_select %p23, %s24, %s25
      %p29 = pneg %p23
      %p30 = scmp.eq.s32.totalorder %s14, 1
      %p31 = por %p29, %p30
      %p32 = scmp.ne.s32.totalorder %s24, %s27
      %p33 = scmp.eq.s32.totalorder %s14, 0
      %p34 = por %p32, %p33
      %p35 = scmp.ne.s32.totalorder %s24, %s27
      %p36 = scmp.eq.s32.totalorder %s19, 1
      %p37 = por %p35, %p36
      %p38 = scmp.ne.s32.totalorder %s27, %s28
      %p39 = scmp.eq.s32.totalorder %s19, 0
      %p40 = por %p38, %p39
      %p41 = scmp.ne.s32.totalorder %s27, %s28
      %p42 = scmp.eq.s32.totalorder %s20, 1
      %p43 = por %p41, %p42
      %p45 = scmp.ne.s32.totalorder %s28, %s44
      %p46 = scmp.eq.s32.totalorder %s20, 0
      %p47 = por %p45, %p46
      %s49 = sadd.s32 %s48, 1
      %p52 = scmp.eq.s32.totalorder %s14, 1
      %p53 = scmp.ne.s32.totalorder %s48, %s50
      %p54 = scmp.eq.s32.totalorder %s14, 0
      %p55 = por %p53, %p54
      %p56 = scmp.ne.s32.totalorder %s48, %s50
      %p57 = scmp.eq.s32.totalorder %s19, 1
      %p58 = por %p56, %p57
      %p59 = scmp.ne.s32.totalorder %s50, %s51
      %p60 = scmp.eq.s32.totalorder %s19, 0
      %p61 = por %p59, %p60
      %p62 = scmp.ne.s32.totalorder %s50, %s51
      %p63 = scmp.eq.s32.totalorder %s20, 1
      %p64 = por %p62, %p63
      %p66 = scmp.ne.s32.totalorder %s51, %s65
      %p67 = scmp.eq.s32.totalorder %s20, 0
      %p68 = por %p66, %p67
      %s70 = sadd.s32 %s69, 1
      %p73 = scmp.eq.s32.totalorder %s14, 1
      %p74 = scmp.ne.s32.totalorder %s69, %s71
      %p75 = scmp.eq.s32.totalorder %s14, 0
      %p76 = por %p74, %p75
      %p77 = scmp.ne.s32.totalorder %s69, %s71
      %p78 = scmp.eq.s32.totalorder %s19, 1
      %p79 = por %p77, %p78
      %p80 = scmp.ne.s32.totalorder %s71, %s72
      %p81 = scmp.eq.s32.totalorder %s19, 0
      %p82 = por %p80, %p81
      %p83 = scmp.ne.s32.totalorder %s71, %s72
      %p84 = scmp.eq.s32.totalorder %s20, 1
      %p85 = por %p83, %p84
      %p87 = scmp.ne.s32.totalorder %s72, %s86
      %p88 = scmp.eq.s32.totalorder %s20, 0
      %p89 = por %p87, %p88
      %s91 = sadd.s32 %s90, 1
      %p94 = scmp.eq.s32.totalorder %s14, 1
      %p95 = scmp.ne.s32.totalorder %s90, %s92
      %p96 = scmp.eq.s32.totalorder %s14, 0
      %p97 = por %p95, %p96
      %p98 = scmp.ne.s32.totalorder %s90, %s92
      %p99 = scmp.eq.s32.totalorder %s19, 1
      %p100 = por %p98, %p99
      %p101 = scmp.ne.s32.totalorder %s92, %s93
      %p102 = scmp.eq.s32.totalorder %s19, 0
      %p103 = por %p101, %p102
      %p104 = scmp.ne.s32.totalorder %s92, %s93
      %p105 = scmp.eq.s32.totalorder %s20, 1
      %p106 = por %p104, %p105
      %p108 = scmp.ne.s32.totalorder %s93, %s107
      %p109 = scmp.eq.s32.totalorder %s20, 0
      %p110 = por %p108, %p109
      %s112 = sadd.s32 %s111, 1
      %p115 = scmp.eq.s32.totalorder %s14, 1
      %p116 = scmp.ne.s32.totalorder %s111, %s113
      %p117 = scmp.eq.s32.totalorder %s14, 0
      %p118 = por %p116, %p117
      %p119 = scmp.ne.s32.totalorder %s111, %s113
      %p120 = scmp.eq.s32.totalorder %s19, 1
      %p121 = por %p119, %p120
      %p122 = scmp.ne.s32.totalorder %s113, %s114
      %p123 = scmp.eq.s32.totalorder %s19, 0
      %p124 = por %p122, %p123
      %p125 = scmp.ne.s32.totalorder %s113, %s114
      %p126 = scmp.eq.s32.totalorder %s20, 1
      %p127 = por %p125, %p126
      %p129 = scmp.ne.s32.totalorder %s114, %s128
      %p130 = scmp.eq.s32.totalorder %s20, 0
      %p131 = por %p129, %p130
      %s133 = sadd.s32 %s132, 1
      %p136 = scmp.eq.s32.totalorder %s14, 1
      %p137 = scmp.ne.s32.totalorder %s132, %s134
      %p138 = scmp.eq.s32.totalorder %s14, 0
      %p139 = por %p137, %p138
      %p140 = scmp.ne.s32.totalorder %s132, %s134
      %p141 = scmp.eq.s32.totalorder %s19, 1
      %p142 = por %p140, %p141
      %p143 = scmp.ne.s32.totalorder %s134, %s135
      %p144 = scmp.eq.s32.totalorder %s19, 0
      %p145 = por %p143, %p144
      %p146 = scmp.ne.s32.totalorder %s134, %s135
      %p147 = scmp.eq.s32.totalorder %s20, 1
      %p148 = por %p146, %p147
      %p150 = scmp.ne.s32.totalorder %s135, %s149
      %p151 = scmp.eq.s32.totalorder %s20, 0
      %p152 = por %p150, %p151
      %s153 = ssub.s32 %s14, %s21
      %p154 = scmp.eq.s32.totalorder %s153, 0
      %s156 = sadd.s32 %s155, 1
      %s157 = scalar_select %p154, %s155, %s156
      %p160 = pneg %p154
      %p161 = scmp.eq.s32.totalorder %s14, 1
      %p162 = por %p160, %p161
      %p163 = scmp.ne.s32.totalorder %s155, %s158
      %p164 = scmp.eq.s32.totalorder %s14, 0
      %p165 = por %p163, %p164
      %p166 = scmp.ne.s32.totalorder %s155, %s158
      %p167 = scmp.eq.s32.totalorder %s19, 1
      %p168 = por %p166, %p167
      %p169 = scmp.ne.s32.totalorder %s158, %s159
      %p170 = scmp.eq.s32.totalorder %s19, 0
      %p171 = por %p169, %p170
      %p172 = scmp.ne.s32.totalorder %s158, %s159
      %p173 = scmp.eq.s32.totalorder %s20, 1
      %p174 = por %p172, %p173
      %p176 = scmp.ne.s32.totalorder %s159, %s175
      %p177 = scmp.eq.s32.totalorder %s20, 0
      %p178 = por %p176, %p177
      %s179 = ssub.s32 %s14, %s21
      %p180 = scmp.eq.s32.totalorder %s179, 0
      %s182 = sadd.s32 %s181, 1
      %s183 = scalar_select %p180, %s181, %s182
      %p186 = pneg %p180
      %p187 = scmp.eq.s32.totalorder %s14, 1
      %p188 = por %p186, %p187
      %p189 = scmp.ne.s32.totalorder %s181, %s184
      %p190 = scmp.eq.s32.totalorder %s14, 0
      %p191 = por %p189, %p190
      %p192 = scmp.ne.s32.totalorder %s181, %s184
      %p193 = scmp.eq.s32.totalorder %s19, 1
      %p194 = por %p192, %p193
      %p195 = scmp.ne.s32.totalorder %s184, %s185
      %p196 = scmp.eq.s32.totalorder %s19, 0
      %p197 = por %p195, %p196
      %p198 = scmp.ne.s32.totalorder %s184, %s185
      %p199 = scmp.eq.s32.totalorder %s20, 1
      %p200 = por %p198, %p199
      %p202 = scmp.ne.s32.totalorder %s185, %s201
      %p203 = scmp.eq.s32.totalorder %s20, 0
      %p204 = por %p202, %p203
      %p205 = scmp.le.s32.totalorder 1, %s14
      %p206 = scmp.lt.s32.totalorder %s14, 3
      %p207 = pnand %p205, %p206
      %p208 = pneg %p207
      // Predicated region
      $region9: #{decoder_block_forward.5} parent=5 // pred_check
        _
      $region10: #{decoder_block_forward.5} parent=5 // pred_check_branch
        %210 = sbr.rel (%p207) target = $region12
      $region11: #{decoder_block_forward.5} parent=5 // pred_region
        %s211 = ssub.s32 %s14, 1
        // Predicated region
        $region13: #{decoder_block_forward.5} parent=11 // pred_check
          %p212 = pneg %p61
        $region14: #{decoder_block_forward.5} parent=11 // pred_check_branch
          %214 = sbr.rel (%p212) target = $region16
        $region15: #{decoder_block_forward.5} parent=11 // pred_region
          _
        $region16: #{decoder_block_forward.5} parent=11 // pred_fallthru
          _
        // Predicated region
        $region17: #{decoder_block_forward.5} parent=11 // pred_check
          %p215 = pneg %p82
        $region18: #{decoder_block_forward.5} parent=11 // pred_check_branch
          %217 = sbr.rel (%p215) target = $region20
        $region19: #{decoder_block_forward.5} parent=11 // pred_region
          _
        $region20: #{decoder_block_forward.5} parent=11 // pred_fallthru
          _
        // Predicated region
        $region21: #{decoder_block_forward.5} parent=11 // pred_check
          %p218 = pneg %p103
        $region22: #{decoder_block_forward.5} parent=11 // pred_check_branch
          %220 = sbr.rel (%p218) target = $region24
        $region23: #{decoder_block_forward.5} parent=11 // pred_region
          _
        $region24: #{decoder_block_forward.5} parent=11 // pred_fallthru
          _
        // Predicated region
        $region25: #{decoder_block_forward.5} parent=11 // pred_check
          %p221 = pneg %p124
        $region26: #{decoder_block_forward.5} parent=11 // pred_check_branch
          %223 = sbr.rel (%p221) target = $region28
        $region27: #{decoder_block_forward.5} parent=11 // pred_region
          _
        $region28: #{decoder_block_forward.5} parent=11 // pred_fallthru
          _
        // Predicated region
        $region29: #{decoder_block_forward.5} parent=11 // pred_check
          %p224 = pneg %p145
        $region30: #{decoder_block_forward.5} parent=11 // pred_check_branch
          %226 = sbr.rel (%p224) target = $region32
        $region31: #{decoder_block_forward.5} parent=11 // pred_region
          _
        $region32: #{decoder_block_forward.5} parent=11 // pred_fallthru
          _
      $region12: #{decoder_block_forward.5} parent=5 // pred_fallthru
        _
      %p227 = scmp.lt.s32.totalorder %s14, 2
      // Predicated region
      $region33: #{decoder_block_forward.5} parent=5 // pred_check
        %p228 = pneg %p227
      $region34: #{decoder_block_forward.5} parent=5 // pred_check_branch
        %230 = sbr.rel (%p228) target = $region36
      $region35: #{decoder_block_forward.5} parent=5 // pred_region
        // Predicated region
        $region37: #{decoder_block_forward.5} parent=35 // pred_check
          %p231 = pneg %p34
        $region38: #{decoder_block_forward.5} parent=35 // pred_check_branch
          %233 = sbr.rel (%p231) target = $region40
        $region39: #{decoder_block_forward.5} parent=35 // pred_region
          %s234 = smul.u32 2, %s14
          %p235 = scmp.lt.s32.totalorder %s234, 3
          %s236 = scalar_select %p235, %s234, 3
          %s237 = smul.addr %s236, 4
          %s238 = scalar_lea.vmem %s0, %s237
          %s239 = smul.u32 2, %s14
        $region40: #{decoder_block_forward.5} parent=35 // pred_fallthru
          _
      $region36: #{decoder_block_forward.5} parent=5 // pred_fallthru
        _
      %p240 = scmp.le.s32.totalorder 1, %s14
      %p241 = scmp.lt.s32.totalorder %s14, 3
      %p242 = pnand %p240, %p241
      %p243 = pneg %p242
      // Predicated region
      $region41: #{decoder_block_forward.5} parent=5 // pred_check
        _
      $region42: #{decoder_block_forward.5} parent=5 // pred_check_branch
        %245 = sbr.rel (%p242) target = $region44
      $region43: #{decoder_block_forward.5} parent=5 // pred_region
        %s246 = ssub.s32 %s14, 1
        %s247 = smul.u32 2, %s19
        %p248 = scmp.lt.s32.totalorder %s247, 3
        %s249 = scalar_select %p248, %s247, 3
        %s250 = smul.addr %s249, 4
        %s251 = scalar_lea.vmem %s0, %s250
        %p252 = pneg %p40
        %p253 = pneg %p37
        %p254 = pneg %p61
        %p255 = pneg %p58
        %p256 = pneg %p82
        %p257 = pneg %p79
        %p258 = pneg %p103
        %p259 = pneg %p100
        %p260 = pneg %p124
        %p261 = pneg %p121
        %p262 = pneg %p145
        %p263 = pneg %p142
        %p264 = pneg %p171
        %p265 = pneg %p168
        %s266 = sand.u32 %s158, 1
        %s267 = sand.u32 %s158, 1
        %s268 = smul.addr %s267, 32
        %s269 = scalar_lea.vmem [#allocation2], %s268
        %p270 = pneg %p197
        %p271 = pneg %p194
        %p272 = scmp.lt.s32.totalorder %s19, 1
        %s273 = scalar_select %p272, %s19, 1
        %s274 = smul.addr %s273, 2
        %s275 = smul.addr %s274, 8
        %s276 = scalar_lea.vmem %s7, %s275
        %s277 = smul.u32 2, %s19
        %p278 = scmp.lt.s32.totalorder %s277, 3
        %s279 = scalar_select %p278, %s277, 3
        %s280 = smul.addr %s279, 4
        %s281 = scalar_lea.vmem %s0, %s280
        %s282 = smul.u32 2, %s19
        %s283 = smul.u32 2, %s19
        %p284 = scmp.lt.s32.totalorder %s19, 1
        %s285 = scalar_select %p284, %s19, 1
        %s286 = smul.addr %s285, 2
        %s287 = smul.addr %s286, 8
        %s288 = scalar_lea.vmem %s7, %s287
        %v289 = vld [vmem:[%s281] sm:$0xff]
        %v290 = vld [vmem:[%s1] sm:$0xf]
        %292 = vset.pattern.permute.xlu0 0
        %293 = vperm.xlu0 %292, %v290
        %v294 = vpop.permute.xlu0 %293
        %v296 = vunpack.c.l.s4 839922192
        %v297 = vunpack.c.0.s8 %v296
        %v298 = vlaneseq
        %v299 = vshrl.u32 %v298, 7
        %v300 = vsub.s32 %v297, %v299
        %v301 = vrot.slane %v294, %v300
        %v303 = vmul.f32 %v289, %v301
        %v304 = vld [vmem:[%s2] sm:$0xf]
        %306 = vset.pattern.permute.xlu0 0
        %307 = vperm.xlu0 %306, %v304
        %v308 = vpop.permute.xlu0 %307
        %v310 = vunpack.c.l.s4 839922192
        %v311 = vunpack.c.0.s8 %v310
        %v312 = vlaneseq
        %v313 = vshrl.u32 %v312, 7
        %v314 = vsub.s32 %v311, %v313
        %v315 = vrot.slane %v308, %v314
        %v317 = vadd.f32 %v303, %v315
        %v318 = vmax.f32 %v317, 0.0
        %v319 = vld [vmem:[%s3] sm:$0x77]
        %v321 = vcombine.high %v318, %v318
        %323 = vrot.lane.b32.xlu0 %v318, 127
        %v324 = vpop.permute.xlu0 %323
        %325 = vrot.lane.b32.xlu0 %v321, 127
        %v326 = vpop.permute.xlu0 %325
        %v327 = vlaneseq
        %v328 = vand.u32 %v327, 127
        %vm329 = vcmp.lt.s32.totalorder %v328, 127
        %v330 = vsel %vm329, %v324, %v326
        %v331 = vsel %vm329, %v326, %v324
        %v333 = vlaneseq
        %v334 = vshrl.u32 %v333, 7
        %v335 = vsub.s32 0, %v334
        %v336 = vrot.slane %v319, %v335
        %v337 = vlaneseq
        %v338 = vshrl.u32 %v337, 7
        %v339 = vsub.s32 4, %v338
        %v340 = vrot.slane %v319, %v339
        %v343 = vlaneseq
        %v344 = vshrl.u32 %v343, 7
        %v345 = vsub.s32 0, %v344
        %v346 = vrot.slane %v336, %v345
        %v347 = vlaneseq
        %v348 = vshrl.u32 %v347, 7
        %v349 = vsub.s32 0, %v348
        %v350 = vrot.slane %v340, %v349
        %v351 = vmul.f32 %v330, %v346
        %v352 = vmul.f32 %v331, %v350
        %353 = vrot.lane.b32.xlu0 %v318, 112
        %v354 = vpop.permute.xlu0 %353
        %355 = vrot.lane.b32.xlu0 %v321, 112
        %v356 = vpop.permute.xlu0 %355
        %vm357 = vcmp.lt.s32.totalorder %v328, 112
        %v358 = vsel %vm357, %v354, %v356
        %v359 = vsel %vm357, %v356, %v354
        %v360 = vlaneseq
        %v361 = vshrl.u32 %v360, 7
        %v362 = vsub.s32 1, %v361
        %v363 = vrot.slane %v319, %v362
        %v364 = vlaneseq
        %v365 = vshrl.u32 %v364, 7
        %v366 = vsub.s32 5, %v365
        %v367 = vrot.slane %v319, %v366
        %v370 = vlaneseq
        %v371 = vshrl.u32 %v370, 7
        %v372 = vsub.s32 1, %v371
        %v373 = vrot.slane %v363, %v372
        %v374 = vlaneseq
        %v375 = vshrl.u32 %v374, 7
        %v376 = vsub.s32 1, %v375
        %v377 = vrot.slane %v367, %v376
        %v378 = vmul.f32 %v358, %v373
        %v379 = vmul.f32 %v359, %v377
        %380 = vrot.lane.b32.xlu0 %v318, 111
        %v381 = vpop.permute.xlu0 %380
        %382 = vrot.lane.b32.xlu0 %v321, 111
        %v383 = vpop.permute.xlu0 %382
        %vm384 = vcmp.lt.s32.totalorder %v328, 111
        %v385 = vsel %vm384, %v381, %v383
        %v386 = vsel %vm384, %v383, %v381
        %v387 = vlaneseq
        %v388 = vshrl.u32 %v387, 7
        %v389 = vsub.s32 2, %v388
        %v390 = vrot.slane %v319, %v389
        %v391 = vlaneseq
        %v392 = vshrl.u32 %v391, 7
        %v393 = vsub.s32 6, %v392
        %v394 = vrot.slane %v319, %v393
        %v397 = vlaneseq
        %v398 = vshrl.u32 %v397, 7
        %v399 = vsub.s32 2, %v398
        %v400 = vrot.slane %v390, %v399
        %v401 = vlaneseq
        %v402 = vshrl.u32 %v401, 7
        %v403 = vsub.s32 2, %v402
        %v404 = vrot.slane %v394, %v403
        %v405 = vmul.f32 %v385, %v400
        %v406 = vmul.f32 %v386, %v404
        %v409 = vrot.slane %v351, 4
        %v410 = vrot.slane %v352, 4
        %v415 = vrot.slane %v405, 4
        %v416 = vrot.slane %v406, 4
        %vm419 = vcmask 1043456
        %v420 = vsel %vm419, %v318, %v409
        %v421 = vsel %vm419, %v321, %v410
        %v422 = vsel %vm419, %v378, %v415
        %v423 = vsel %vm419, %v379, %v416
        %v424 = vld [vmem:[%s4] sm:$0xff]
        %v425 = vld [vmem:[%s4 + $0x8] sm:$0xff]
        %v426 = vld [vmem:[%s5] sm:$0xff]
        %v427 = vld [vmem:[%s5 + $0x8] sm:$0xff]
        %429 = vset.pattern.permute.xlu0 0
        %430 = vperm.xlu0 %429, %v426
        %v431 = vpop.permute.xlu0 %430
        %434 = vset.pattern.permute.xlu0 0
        %435 = vperm.xlu0 %434, %v427
        %v436 = vpop.permute.xlu0 %435
        %vm438 = vcmask 130048
        %v440 = vsel %vm438, %v424, 0
        %v443 = vsel %vm438, %v425, 0
        %445 = vmatprep.subr.mxu0 %v421
        %446 = vmatpush1.msra.mxu0 %v420
        %447 = vmatprep.subr.mxu0 %v423
        %448 = vmatpush1.msra.mxu0 %v422
        %449 = vmatprep.subr.mxu0 0.0
        %450 = vmatpush1.msra.mxu0 0.0
        %451 = vmatprep.subr.mxu0 0.0
        %452 = vmatpush1.msra.mxu0 0.0
        %453 = vmatprep.subr.mxu0 0.0
        %454 = vmatpush1.msra.mxu0 0.0
        %455 = vmatprep.subr.mxu0 0.0
        %456 = vmatpush1.msra.mxu0 0.0
        %457 = vmatprep.subr.mxu0 0.0
        %458 = vmatpush1.msra.mxu0 0.0
        %459 = vmatprep.subr.mxu0 0.0
        %460 = vmatpush1.msra.mxu0 0.0
        %461 = vmatprep.subr.mxu0 0.0
        %462 = vmatpush1.msra.mxu0 0.0
        %463 = vmatprep.subr.mxu0 0.0
        %464 = vmatpush1.msra.mxu0 0.0
        %465 = vmatprep.subr.mxu0 0.0
        %466 = vmatpush1.msra.mxu0 0.0
        %467 = vmatprep.subr.mxu0 0.0
        %468 = vmatpush1.msra.mxu0 0.0
        %469 = vmatprep.subr.mxu0 0.0
        %470 = vmatpush1.msra.mxu0 0.0
        %471 = vmatprep.subr.mxu0 0.0
        %472 = vmatpush1.msra.mxu0 0.0
        %473 = vmatprep.subr.mxu0 0.0
        %474 = vmatpush1.msra.mxu0 0.0
        %475 = vmatprep.subr.mxu0 0.0
        %476 = vmatpush1.msra.mxu0 0.0
        %477 = vmatprep.subr.mxu0 0.0
        %478 = vmatpush1.msra.mxu0 0.0
        %479 = vmatprep.subr.mxu0 0.0
        %480 = vmatpush1.msra.mxu0 0.0
        %481 = vmatprep.subr.mxu0 0.0
        %482 = vmatpush1.msra.mxu0 0.0
        %483 = vmatprep.subr.mxu0 0.0
        %484 = vmatpush1.msra.mxu0 0.0
        %485 = vmatprep.subr.mxu0 0.0
        %486 = vmatpush1.msra.mxu0 0.0
        %487 = vmatprep.subr.mxu0 0.0
        %488 = vmatpush1.msra.mxu0 0.0
        %489 = vmatprep.subr.mxu0 0.0
        %490 = vmatpush1.msra.mxu0 0.0
        %491 = vmatprep.subr.mxu0 0.0
        %492 = vmatpush1.msra.mxu0 0.0
        %493 = vmatprep.subr.mxu0 0.0
        %494 = vmatpush1.msra.mxu0 0.0
        %495 = vmatprep.subr.mxu0 0.0
        %496 = vmatpush1.msra.mxu0 0.0
        %497 = vmatprep.subr.mxu0 0.0
        %498 = vmatpush1.msra.mxu0 0.0
        %499 = vmatprep.subr.mxu0 0.0
        %500 = vmatpush1.msra.mxu0 0.0
        %501 = vmatprep.subr.mxu0 0.0
        %502 = vmatpush1.msra.mxu0 0.0
        %503 = vmatprep.subr.mxu0 0.0
        %504 = vmatpush1.msra.mxu0 0.0
        %505 = vmatprep.subr.mxu0 0.0
        %506 = vmatpush1.msra.mxu0 0.0
        %507 = vmatprep.subr.mxu0 0.0
        %508 = vmatpush1.msra.mxu0 0.0
        %509 = vmatprep.mubr.f32.mxu0 0.0
        %510 = vmatmul.mubr.f32.gmra.mrb[0].mxu0 %v440
        %v511 = vpop.f32.mrb[0].mxu0
        %v512 = vadd.f32 %v431, %v511
        %v513 = vpop.f32.mrb[0].mxu0
        %v514 = vadd.f32 %v431, %v513
        %515 = vmatprep.mubr.f32.mxu0 0.0
        %516 = vmatmul.mubr.f32.gmra.mrb[0].mxu0 %v443
        %v517 = vpop.f32.mrb[0].mxu0
        %v518 = vadd.f32 %v436, %v517
        %v519 = vpop.f32.mrb[0].mxu0
        %v520 = vadd.f32 %v436, %v519
        %521 = vdwg.mxu0
        %522 = vst [vmem:[%s269] sm:$0xff] %v512
        %523 = vst [vmem:[%s269 + $0x8] sm:$0xff] %v514
        %524 = vst [vmem:[%s269 + $0x10] sm:$0xff] %v518
        %525 = vst [vmem:[%s269 + $0x18] sm:$0xff] %v520
        %v526 = vadd.f32 %v512, %v514
        %527 = vadd.xlane.f32.xlu0 %v526
        %v528 = vpop.xlane.xlu0 %527
        %v529 = vadd.f32 %v518, %v520
        %530 = vadd.xlane.f32.xlu0 %v529
        %v531 = vpop.xlane.xlu0 %530
        %v532 = vmul.f32 %v528, 0.00390625
        %v533 = vmul.f32 %v531, 0.00390625
        %v534 = vsub.f32 %v512, %v532
        %v535 = vsub.f32 %v514, %v532
        %v536 = vsub.f32 %v518, %v533
        %v537 = vsub.f32 %v520, %v533
        %v538 = vmul.f32 %v534, %v534
        %v539 = vmul.f32 %v535, %v535
        %v540 = vmul.f32 %v536, %v536
        %v541 = vmul.f32 %v537, %v537
        %v542 = vadd.f32 %v538, %v539
        %543 = vadd.xlane.f32.xlu0 %v542
        %v544 = vpop.xlane.xlu0 %543
        %v545 = vadd.f32 %v540, %v541
        %546 = vadd.xlane.f32.xlu0 %v545
        %v547 = vpop.xlane.xlu0 %546
        %vm548 = vcmask 7168
        %v549 = vsel %vm548, %v528, %v544
        %v550 = vsel %vm548, %v531, %v547
        %vm551 = vcmask 15360
        %552 = vst.msk [vmem:[%s288] sm:$0xff] %vm551, %v549
        %553 = vst.msk [vmem:[%s288 + $0x8] sm:$0xff] %vm551, %v550
        %s554 = sand.u32 %s158, 1
        %s555 = sand.u32 %s158, 1
        %s556 = smul.addr %s555, 32
        %s557 = scalar_lea.vmem [#allocation2], %s556
        %p558 = scmp.lt.s32.totalorder %s19, 1
        %s559 = scalar_select %p558, %s19, 1
        %s560 = smul.addr %s559, 2
        %s561 = smul.addr %s560, 8
        %s562 = scalar_lea.vmem %s7, %s561
        // Predicated region
        $region45: #{decoder_block_forward.5} parent=43 // pred_check
          %p563 = pneg %p168
        $region46: #{decoder_block_forward.5} parent=43 // pred_check_branch
          %565 = sbr.rel (%p563) target = $region48
        $region47: #{decoder_block_forward.5} parent=43 // pred_region
          %s566 = smul.u32 2, %s19
          %s567 = smul.addr %s566, 8
          %s568 = scalar_lea.vmem %s6, %s567
          // Predicated region
          $region49: #{decoder_block_forward.5} parent=47 // pred_check
            _
          $region50: #{decoder_block_forward.5} parent=47 // pred_check_branch
            %570 = sbr.rel (0) target = $region52
          $region51: #{decoder_block_forward.5} parent=47 // pred_region
            // Predicated region
            $region53: #{decoder_block_forward.5} parent=51 // pred_check
              _
            $region54: #{decoder_block_forward.5} parent=51 // pred_check_branch
              %572 = sbr.rel (0) target = $region56
            $region55: #{decoder_block_forward.5} parent=51 // pred_region
              loop: start=0, step=1, limit=1
              $region57: #{decoder_block_forward.5} parent=55 // loop_pre_header
                _
              $region58: #{decoder_block_forward.5} parent=55 // loop_header
                %s574 = sphi 0, %s578
                %p575 = scmp.ge.s32.totalorder %s574, 1
                %s579 = sphi %s557, %s557
                %s580 = sphi %s568, %s568
              $region59: #{decoder_block_forward.5} parent=55 // loop_header_branch
                %577 = sbr.rel (%p575) target = $region63
              $region60: #{decoder_block_forward.5} parent=55 // loop_body
                %v581 = vld [vmem:[%s579] sm:$0xff]
                %582 = vst [vmem:[%s580] sm:$0xff] %v581
                %v583 = vld [vmem:[%s579 + $0x8] sm:$0xff]
                %584 = vst [vmem:[%s580 + $0x8] sm:$0xff] %v583
                %v585 = vld [vmem:[%s579 + $0x10] sm:$0xff]
                %586 = vst [vmem:[%s580 + $0x20] sm:$0xff] %v585
                %v587 = vld [vmem:[%s579 + $0x18] sm:$0xff]
                %588 = vst [vmem:[%s580 + $0x28] sm:$0xff] %v587
              $region61: #{decoder_block_forward.5} parent=55 // loop_footer
                %s578 = sadd.s32 1, %s574
              $region62: #{decoder_block_forward.5} parent=55 // loop_footer_branch
                %573 = sbr.rel target = $region58
              $region63: #{decoder_block_forward.5} parent=55 // loop_exit
                _
            $region56: #{decoder_block_forward.5} parent=51 // pred_fallthru
              _
            // Predicated region
            $region64: #{decoder_block_forward.5} parent=51 // pred_check
              _
            $region65: #{decoder_block_forward.5} parent=51 // pred_check_branch
              %590 = sbr.rel target = $region67
            $region66: #{decoder_block_forward.5} parent=51 // pred_region
              _
            $region67: #{decoder_block_forward.5} parent=51 // pred_fallthru
              _
          $region52: #{decoder_block_forward.5} parent=47 // pred_fallthru
            _
          %591 = vnop
        $region48: #{decoder_block_forward.5} parent=43 // pred_fallthru
          _
        // Predicated region
        $region68: #{decoder_block_forward.5} parent=43 // pred_check
          %p592 = pneg %p194
        $region69: #{decoder_block_forward.5} parent=43 // pred_check_branch
          %594 = sbr.rel (%p592) target = $region71
        $region70: #{decoder_block_forward.5} parent=43 // pred_region
          _
        $region71: #{decoder_block_forward.5} parent=43 // pred_fallthru
          _
      $region44: #{decoder_block_forward.5} parent=5 // pred_fallthru
        _
      %p595 = scmp.le.s32.totalorder 2, %s14
      // Predicated region
      $region72: #{decoder_block_forward.5} parent=5 // pred_check
        %p596 = pneg %p595
      $region73: #{decoder_block_forward.5} parent=5 // pred_check_branch
        %598 = sbr.rel (%p596) target = $region75
      $region74: #{decoder_block_forward.5} parent=5 // pred_region
        %s599 = ssub.s32 %s14, 2
        // Predicated region
        $region76: #{decoder_block_forward.5} parent=74 // pred_check
          %p600 = pneg %p174
        $region77: #{decoder_block_forward.5} parent=74 // pred_check_branch
          %602 = sbr.rel (%p600) target = $region79
        $region78: #{decoder_block_forward.5} parent=74 // pred_region
          %s603 = sand.u32 %s159, 1
          %s604 = sand.u32 %s159, 1
          %s605 = smul.addr %s604, 32
          %s606 = scalar_lea.vmem [#allocation2], %s605
        $region79: #{decoder_block_forward.5} parent=74 // pred_fallthru
          _
        // Predicated region
        $region80: #{decoder_block_forward.5} parent=74 // pred_check
          %p607 = pneg %p200
        $region81: #{decoder_block_forward.5} parent=74 // pred_check_branch
          %609 = sbr.rel (%p607) target = $region83
        $region82: #{decoder_block_forward.5} parent=74 // pred_region
          %p610 = scmp.lt.s32.totalorder %s20, 1
          %s611 = scalar_select %p610, %s20, 1
          %s612 = smul.addr %s611, 2
          %s613 = smul.addr %s612, 8
          %s614 = scalar_lea.vmem %s7, %s613
        $region83: #{decoder_block_forward.5} parent=74 // pred_fallthru
          _
      $region75: #{decoder_block_forward.5} parent=5 // pred_fallthru
        _
    $region6: #{decoder_block_forward.5} parent=1 // loop_footer
      %s18 = sadd.s32 1, %s14
    $region7: #{decoder_block_forward.5} parent=1 // loop_footer_branch
      %13 = sbr.rel target = $region3
    $region8: #{decoder_block_forward.5} parent=1 // loop_exit
      _

// kernel: decoder_block_forward.4
$region0: #{decoder_block_forward.4}
  #allocation0 [shape = 'u32[]', space=smem, size = 0x4, offset = 0x4, fixed_abs, tag = 'smem constant byte address 0x4 - core index']
  #allocation1 [shape = 'u32[144,128]{1,0:T(1,128)}', space=vmem, size = 0x12000, scoped, tag = 'internal scratch']
  %s0 = inlined_call_operand.vmem [shape: f32[2,16,256], index: 0, kind: input, shape index: {}]
  %s1 = inlined_call_operand.vmem [shape: f32[4,16], index: 1, kind: input, shape index: {}]
  %s2 = inlined_call_operand.vmem [shape: f32[4,1], index: 2, kind: input, shape index: {}]
  %s3 = inlined_call_operand.vmem [shape: f32[4,512], index: 3, kind: output, shape index: {0}]
  %s4 = inlined_call_operand.vmem [shape: f32[2,4,2], index: 4, kind: output, shape index: {1}]
  %5 = xla_tuple %s3, %s4
  %s6 = sld [smem:[#allocation0]]
  $region53: #{decoder_block_forward.4} parent=0
    _
  %s8 = ssub.s32 1, %s6
  %s9 = scalar_select 0, %s8, %s6
  loop: start=0, step=1, limit=4
  $region2: #{decoder_block_forward.4} parent=0 // loop_pre_header
    _
  $region3: #{decoder_block_forward.4} parent=0 // loop_header
    %s11 = sphi 0, %s15
    %p12 = scmp.ge.s32.totalorder %s11, 4
    %s18 = sphi 0, %s30
    %s19 = sphi 0, %s26
    %s20 = sphi 0, %s18
    %s21 = sphi 0, %s19
    %s22 = sphi 0, %s20
    %s23 = sphi 0, %s21
    %s35 = sphi 0, %s37
    %s38 = sphi 0, %s35
    %s39 = sphi 0, %s38
    %s55 = sphi 0, %s39
    %s59 = sphi 0, %s59
    %s61 = sphi 0, %s59
    %s62 = sphi 0, %s61
    %s76 = sphi 0, %s62
    %s80 = sphi 0, %s80
    %s82 = sphi 0, %s80
    %s83 = sphi 0, %s82
    %s97 = sphi 0, %s83
    %s105 = sphi 0, %s107
    %s108 = sphi 0, %s105
    %s109 = sphi 0, %s108
    %s125 = sphi 0, %s109
    %s133 = sphi 0, %s135
    %s136 = sphi 0, %s133
    %s137 = sphi 0, %s136
    %s153 = sphi 0, %s137
  $region4: #{decoder_block_forward.4} parent=0 // loop_header_branch
    %14 = sbr.rel (%p12) target = $region8
  $region5: #{decoder_block_forward.4} parent=0 // loop_body
    %s16 = ssub.s32 %s11, 1
    %s17 = ssub.s32 %s11, 2
    %s24 = sadd.s32 1, %s19
    %p25 = scmp.ge.s32.totalorder %s24, 1
    %s26 = scalar_select %p25, 0, %s24
    %s27 = sadd.s32 1, %s18
    %s28 = scalar_select %p25, %s27, %s18
    %p29 = scmp.ge.s32.totalorder %s28, 2
    %s30 = scalar_select %p29, 0, %s28
    %s31 = ssub.s32 %s18, %s30
    %s32 = ssub.s32 %s19, %s26
    %s33 = sor.u32 %s31, %s32
    %p34 = scmp.eq.s32.totalorder %s33, 0
    %s36 = sadd.s32 %s35, 1
    %s37 = scalar_select %p34, %s35, %s36
    %p40 = pneg %p34
    %p41 = scmp.eq.s32.totalorder %s11, 1
    %p42 = por %p40, %p41
    %p43 = scmp.ne.s32.totalorder %s35, %s38
    %p44 = scmp.eq.s32.totalorder %s11, 0
    %p45 = por %p43, %p44
    %p46 = scmp.ne.s32.totalorder %s35, %s38
    %p47 = scmp.eq.s32.totalorder %s16, 1
    %p48 = por %p46, %p47
    %p49 = scmp.ne.s32.totalorder %s38, %s39
    %p50 = scmp.eq.s32.totalorder %s16, 0
    %p51 = por %p49, %p50
    %p52 = scmp.ne.s32.totalorder %s38, %s39
    %p53 = scmp.eq.s32.totalorder %s17, 1
    %p54 = por %p52, %p53
    %p56 = scmp.ne.s32.totalorder %s39, %s55
    %p57 = scmp.eq.s32.totalorder %s17, 0
    %p58 = por %p56, %p57
    %s60 = sadd.s32 %s59, 1
    %p63 = scmp.eq.s32.totalorder %s11, 1
    %p64 = scmp.ne.s32.totalorder %s59, %s61
    %p65 = scmp.eq.s32.totalorder %s11, 0
    %p66 = por %p64, %p65
    %p67 = scmp.ne.s32.totalorder %s59, %s61
    %p68 = scmp.eq.s32.totalorder %s16, 1
    %p69 = por %p67, %p68
    %p70 = scmp.ne.s32.totalorder %s61, %s62
    %p71 = scmp.eq.s32.totalorder %s16, 0
    %p72 = por %p70, %p71
    %p73 = scmp.ne.s32.totalorder %s61, %s62
    %p74 = scmp.eq.s32.totalorder %s17, 1
    %p75 = por %p73, %p74
    %p77 = scmp.ne.s32.totalorder %s62, %s76
    %p78 = scmp.eq.s32.totalorder %s17, 0
    %p79 = por %p77, %p78
    %s81 = sadd.s32 %s80, 1
    %p84 = scmp.eq.s32.totalorder %s11, 1
    %p85 = scmp.ne.s32.totalorder %s80, %s82
    %p86 = scmp.eq.s32.totalorder %s11, 0
    %p87 = por %p85, %p86
    %p88 = scmp.ne.s32.totalorder %s80, %s82
    %p89 = scmp.eq.s32.totalorder %s16, 1
    %p90 = por %p88, %p89
    %p91 = scmp.ne.s32.totalorder %s82, %s83
    %p92 = scmp.eq.s32.totalorder %s16, 0
    %p93 = por %p91, %p92
    %p94 = scmp.ne.s32.totalorder %s82, %s83
    %p95 = scmp.eq.s32.totalorder %s17, 1
    %p96 = por %p94, %p95
    %p98 = scmp.ne.s32.totalorder %s83, %s97
    %p99 = scmp.eq.s32.totalorder %s17, 0
    %p100 = por %p98, %p99
    %s101 = sadd.s32 %s18, %s19
    %s102 = sadd.s32 %s30, %s26
    %s103 = ssub.s32 %s101, %s102
    %p104 = scmp.eq.s32.totalorder %s103, 0
    %s106 = sadd.s32 %s105, 1
    %s107 = scalar_select %p104, %s105, %s106
    %p110 = pneg %p104
    %p111 = scmp.eq.s32.totalorder %s11, 1
    %p112 = por %p110, %p111
    %p113 = scmp.ne.s32.totalorder %s105, %s108
    %p114 = scmp.eq.s32.totalorder %s11, 0
    %p115 = por %p113, %p114
    %p116 = scmp.ne.s32.totalorder %s105, %s108
    %p117 = scmp.eq.s32.totalorder %s16, 1
    %p118 = por %p116, %p117
    %p119 = scmp.ne.s32.totalorder %s108, %s109
    %p120 = scmp.eq.s32.totalorder %s16, 0
    %p121 = por %p119, %p120
    %p122 = scmp.ne.s32.totalorder %s108, %s109
    %p123 = scmp.eq.s32.totalorder %s17, 1
    %p124 = por %p122, %p123
    %p126 = scmp.ne.s32.totalorder %s109, %s125
    %p127 = scmp.eq.s32.totalorder %s17, 0
    %p128 = por %p126, %p127
    %s129 = sadd.s32 %s18, %s19
    %s130 = sadd.s32 %s30, %s26
    %s131 = ssub.s32 %s129, %s130
    %p132 = scmp.eq.s32.totalorder %s131, 0
    %s134 = sadd.s32 %s133, 1
    %s135 = scalar_select %p132, %s133, %s134
    %p138 = pneg %p132
    %p139 = scmp.eq.s32.totalorder %s11, 1
    %p140 = por %p138, %p139
    %p141 = scmp.ne.s32.totalorder %s133, %s136
    %p142 = scmp.eq.s32.totalorder %s11, 0
    %p143 = por %p141, %p142
    %p144 = scmp.ne.s32.totalorder %s133, %s136
    %p145 = scmp.eq.s32.totalorder %s16, 1
    %p146 = por %p144, %p145
    %p147 = scmp.ne.s32.totalorder %s136, %s137
    %p148 = scmp.eq.s32.totalorder %s16, 0
    %p149 = por %p147, %p148
    %p150 = scmp.ne.s32.totalorder %s136, %s137
    %p151 = scmp.eq.s32.totalorder %s17, 1
    %p152 = por %p150, %p151
    %p154 = scmp.ne.s32.totalorder %s137, %s153
    %p155 = scmp.eq.s32.totalorder %s17, 0
    %p156 = por %p154, %p155
    %p157 = scmp.le.s32.totalorder 1, %s11
    %p158 = scmp.lt.s32.totalorder %s11, 3
    %p159 = pnand %p157, %p158
    %p160 = pneg %p159
    // Predicated region
    $region9: #{decoder_block_forward.4} parent=5 // pred_check
      _
    $region10: #{decoder_block_forward.4} parent=5 // pred_check_branch
      %162 = sbr.rel (%p159) target = $region12
    $region11: #{decoder_block_forward.4} parent=5 // pred_region
      %s163 = ssub.s32 %s11, 1
      // Predicated region
      $region13: #{decoder_block_forward.4} parent=11 // pred_check
        %p164 = pneg %p72
      $region14: #{decoder_block_forward.4} parent=11 // pred_check_branch
        %166 = sbr.rel (%p164) target = $region16
      $region15: #{decoder_block_forward.4} parent=11 // pred_region
        _
      $region16: #{decoder_block_forward.4} parent=11 // pred_fallthru
        _
      // Predicated region
      $region17: #{decoder_block_forward.4} parent=11 // pred_check
        %p167 = pneg %p93
      $region18: #{decoder_block_forward.4} parent=11 // pred_check_branch
        %169 = sbr.rel (%p167) target = $region20
      $region19: #{decoder_block_forward.4} parent=11 // pred_region
        _
      $region20: #{decoder_block_forward.4} parent=11 // pred_fallthru
        _
    $region12: #{decoder_block_forward.4} parent=5 // pred_fallthru
      _
    %p170 = scmp.lt.s32.totalorder %s11, 2
    // Predicated region
    $region21: #{decoder_block_forward.4} parent=5 // pred_check
      %p171 = pneg %p170
    $region22: #{decoder_block_forward.4} parent=5 // pred_check_branch
      %173 = sbr.rel (%p171) target = $region24
    $region23: #{decoder_block_forward.4} parent=5 // pred_region
      // Predicated region
      $region25: #{decoder_block_forward.4} parent=23 // pred_check
        %p174 = pneg %p45
      $region26: #{decoder_block_forward.4} parent=23 // pred_check_branch
        %176 = sbr.rel (%p174) target = $region28
      $region27: #{decoder_block_forward.4} parent=23 // pred_region
        %s177 = smul.u32 2, %s19
        %p178 = scmp.lt.s32.totalorder %s18, 1
        %s179 = scalar_select %p178, %s18, 1
        %p180 = scmp.lt.s32.totalorder %s177, 1
        %s181 = scalar_select %p180, %s177, 1
        %s182 = smul.addr %s179, 4
        %s183 = sadd.s32 %s181, %s182
        %s184 = smul.addr %s183, 8
        %s185 = scalar_lea.vmem %s0, %s184
        %s186 = smul.u32 2, %s19
      $region28: #{decoder_block_forward.4} parent=23 // pred_fallthru
        _
    $region24: #{decoder_block_forward.4} parent=5 // pred_fallthru
      _
    %p187 = scmp.le.s32.totalorder 1, %s11
    %p188 = scmp.lt.s32.totalorder %s11, 3
    %p189 = pnand %p187, %p188
    %p190 = pneg %p189
    // Predicated region
    $region29: #{decoder_block_forward.4} parent=5 // pred_check
      _
    $region30: #{decoder_block_forward.4} parent=5 // pred_check_branch
      %192 = sbr.rel (%p189) target = $region32
    $region31: #{decoder_block_forward.4} parent=5 // pred_region
      %s193 = ssub.s32 %s11, 1
      %s194 = smul.u32 2, %s21
      %p195 = scmp.lt.s32.totalorder %s20, 1
      %s196 = scalar_select %p195, %s20, 1
      %p197 = scmp.lt.s32.totalorder %s194, 1
      %s198 = scalar_select %p197, %s194, 1
      %s199 = smul.addr %s196, 4
      %s200 = sadd.s32 %s198, %s199
      %s201 = smul.addr %s200, 8
      %s202 = scalar_lea.vmem %s0, %s201
      %p203 = pneg %p51
      %p204 = pneg %p48
      %p205 = pneg %p72
      %p206 = pneg %p69
      %p207 = pneg %p93
      %p208 = pneg %p90
      %p209 = pneg %p121
      %p210 = pneg %p118
      %s211 = sadd.s32 %s20, %s21
      %s212 = smul.u32 2, %s211
      %p213 = scmp.lt.s32.totalorder %s212, 3
      %s214 = scalar_select %p213, %s212, 3
      %s215 = smul.addr %s214, 4
      %s216 = scalar_lea.vmem %s3, %s215
      %p217 = pneg %p149
      %p218 = pneg %p146
      %s219 = sadd.s32 %s20, %s21
      %p220 = scmp.lt.s32.totalorder %s219, 1
      %s221 = scalar_select %p220, %s219, 1
      %s222 = smul.addr %s221, 4
      %s223 = scalar_lea.vmem %s4, %s222
      %s224 = smul.u32 2, %s21
      %p225 = scmp.lt.s32.totalorder %s20, 1
      %s226 = scalar_select %p225, %s20, 1
      %p227 = scmp.lt.s32.totalorder %s224, 1
      %s228 = scalar_select %p227, %s224, 1
      %s229 = smul.addr %s226, 4
      %s230 = sadd.s32 %s228, %s229
      %s231 = smul.addr %s230, 8
      %s232 = scalar_lea.vmem %s0, %s231
      %s233 = smul.u32 2, %s21
      %s234 = sadd.s32 %s20, %s21
      %s235 = smul.u32 2, %s234
      %p236 = scmp.lt.s32.totalorder %s235, 3
      %s237 = scalar_select %p236, %s235, 3
      %s238 = smul.addr %s237, 4
      %s239 = scalar_lea.vmem %s3, %s238
      %s240 = sadd.s32 %s20, %s21
      %s241 = smul.u32 2, %s240
      %s242 = sadd.s32 %s20, %s21
      %p243 = scmp.lt.s32.totalorder %s242, 1
      %s244 = scalar_select %p243, %s242, 1
      %s245 = smul.addr %s244, 4
      %s246 = scalar_lea.vmem %s4, %s245
      %s247 = sadd.s32 %s20, %s21
      %v248 = vld [vmem:[%s232] sm:$0xff]
      %v249 = vld [vmem:[%s232 + $0x8] sm:$0xff]
      %v250 = vld [vmem:[%s232 + $0x10] sm:$0xff]
      %v251 = vld [vmem:[%s232 + $0x18] sm:$0xff]
      %v252 = vld [vmem:[%s1] sm:$0xf]
      %v253 = vld [vmem:[%s2] sm:$0xf]
      %255 = vset.pattern.permute.xlu0 0
      %256 = vperm.xlu0 %255, %v253
      %v257 = vpop.permute.xlu0 %256
      %vm259 = vcmask 130048
      %v261 = vsel %vm259, %v252, 0
      %263 = vmatprep.subr.mxu0 %v249
      %264 = vmatpush1.msra.mxu0 %v248
      %265 = vmatprep.subr.mxu0 %v251
      %266 = vmatpush1.msra.mxu0 %v250
      %267 = vmatprep.subr.mxu0 0.0
      %268 = vmatpush1.msra.mxu0 0.0
      %269 = vmatprep.subr.mxu0 0.0
      %270 = vmatpush1.msra.mxu0 0.0
      %271 = vmatprep.subr.mxu0 0.0
      %272 = vmatpush1.msra.mxu0 0.0
      %273 = vmatprep.subr.mxu0 0.0
      %274 = vmatpush1.msra.mxu0 0.0
      %275 = vmatprep.subr.mxu0 0.0
      %276 = vmatpush1.msra.mxu0 0.0
      %277 = vmatprep.subr.mxu0 0.0
      %278 = vmatpush1.msra.mxu0 0.0
      %279 = vmatprep.subr.mxu0 0.0
      %280 = vmatpush1.msra.mxu0 0.0
      %281 = vmatprep.subr.mxu0 0.0
      %282 = vmatpush1.msra.mxu0 0.0
      %283 = vmatprep.subr.mxu0 0.0
      %284 = vmatpush1.msra.mxu0 0.0
      %285 = vmatprep.subr.mxu0 0.0
      %286 = vmatpush1.msra.mxu0 0.0
      %287 = vmatprep.subr.mxu0 0.0
      %288 = vmatpush1.msra.mxu0 0.0
      %289 = vmatprep.subr.mxu0 0.0
      %290 = vmatpush1.msra.mxu0 0.0
      %291 = vmatprep.subr.mxu0 0.0
      %292 = vmatpush1.msra.mxu0 0.0
      %293 = vmatprep.subr.mxu0 0.0
      %294 = vmatpush1.msra.mxu0 0.0
      %295 = vmatprep.subr.mxu0 0.0
      %296 = vmatpush1.msra.mxu0 0.0
      %297 = vmatprep.subr.mxu0 0.0
      %298 = vmatpush1.msra.mxu0 0.0
      %299 = vmatprep.subr.mxu0 0.0
      %300 = vmatpush1.msra.mxu0 0.0
      %301 = vmatprep.subr.mxu0 0.0
      %302 = vmatpush1.msra.mxu0 0.0
      %303 = vmatprep.subr.mxu0 0.0
      %304 = vmatpush1.msra.mxu0 0.0
      %305 = vmatprep.subr.mxu0 0.0
      %306 = vmatpush1.msra.mxu0 0.0
      %307 = vmatprep.subr.mxu0 0.0
      %308 = vmatpush1.msra.mxu0 0.0
      %309 = vmatprep.subr.mxu0 0.0
      %310 = vmatpush1.msra.mxu0 0.0
      %311 = vmatprep.subr.mxu0 0.0
      %312 = vmatpush1.msra.mxu0 0.0
      %313 = vmatprep.subr.mxu0 0.0
      %314 = vmatpush1.msra.mxu0 0.0
      %315 = vmatprep.subr.mxu0 0.0
      %316 = vmatpush1.msra.mxu0 0.0
      %317 = vmatprep.subr.mxu0 0.0
      %318 = vmatpush1.msra.mxu0 0.0
      %319 = vmatprep.subr.mxu0 0.0
      %320 = vmatpush1.msra.mxu0 0.0
      %321 = vmatprep.subr.mxu0 0.0
      %322 = vmatpush1.msra.mxu0 0.0
      %323 = vmatprep.subr.mxu0 0.0
      %324 = vmatpush1.msra.mxu0 0.0
      %325 = vmatprep.subr.mxu0 0.0
      %326 = vmatpush1.msra.mxu0 0.0
      %327 = vmatprep.mubr.f32.mxu0 0.0
      %328 = vmatmul.mubr.f32.gmra.mrb[0].mxu0 %v261
      %v329 = vpop.f32.mrb[0].mxu0
      %v330 = vadd.f32 %v257, %v329
      %v331 = vpop.f32.mrb[0].mxu0
      %v332 = vadd.f32 %v257, %v331
      %333 = vdwg.mxu0
      %v336 = vcombine.low %v330, %v332
      %338 = vst [vmem:[%s239] sm:$0xff] %v336
      %vm339 = vcmask 1043456
      %v340 = vsel %vm339, %v330, 0.0
      %v341 = vsel %vm339, %v332, 0.0
      %v342 = vadd.f32 %v340, %v341
      %343 = vadd.xlane.f32.xlu0 %v342
      %v344 = vpop.xlane.xlu0 %343
      %v345 = vmul.f32 %v344, 0.00390625
      %v346 = vsub.f32 %v330, %v345
      %v347 = vsub.f32 %v332, %v345
      %v348 = vmul.f32 %v346, %v346
      %v349 = vmul.f32 %v347, %v347
      %v350 = vsel %vm339, %v348, 0.0
      %v351 = vsel %vm339, %v349, 0.0
      %v352 = vadd.f32 %v350, %v351
      %353 = vadd.xlane.f32.xlu0 %v352
      %v354 = vpop.xlane.xlu0 %353
      %vm355 = vcmask 7168
      %v356 = vsel %vm355, %v344, %v354
      %vm357 = vcmask 11264
      %358 = vst.msk [vmem:[%s246] sm:$0xf] %vm357, %v356
      %s359 = sadd.s32 %s20, %s21
      %s360 = smul.u32 2, %s359
      %p361 = scmp.lt.s32.totalorder %s360, 3
      %s362 = scalar_select %p361, %s360, 3
      %s363 = smul.addr %s362, 4
      %s364 = scalar_lea.vmem %s3, %s363
      %s365 = sadd.s32 %s20, %s21
      %p366 = scmp.lt.s32.totalorder %s365, 1
      %s367 = scalar_select %p366, %s365, 1
      %s368 = smul.addr %s367, 4
      %s369 = scalar_lea.vmem %s4, %s368
      // Predicated region
      $region33: #{decoder_block_forward.4} parent=31 // pred_check
        %p370 = pneg %p118
      $region34: #{decoder_block_forward.4} parent=31 // pred_check_branch
        %372 = sbr.rel (%p370) target = $region36
      $region35: #{decoder_block_forward.4} parent=31 // pred_region
        %s373 = sadd.s32 %s20, %s21
        %s374 = smul.u32 2, %s373
      $region36: #{decoder_block_forward.4} parent=31 // pred_fallthru
        _
      // Predicated region
      $region37: #{decoder_block_forward.4} parent=31 // pred_check
        %p375 = pneg %p146
      $region38: #{decoder_block_forward.4} parent=31 // pred_check_branch
        %377 = sbr.rel (%p375) target = $region40
      $region39: #{decoder_block_forward.4} parent=31 // pred_region
        %s378 = sadd.s32 %s20, %s21
      $region40: #{decoder_block_forward.4} parent=31 // pred_fallthru
        _
    $region32: #{decoder_block_forward.4} parent=5 // pred_fallthru
      _
    %p379 = scmp.le.s32.totalorder 2, %s11
    // Predicated region
    $region41: #{decoder_block_forward.4} parent=5 // pred_check
      %p380 = pneg %p379
    $region42: #{decoder_block_forward.4} parent=5 // pred_check_branch
      %382 = sbr.rel (%p380) target = $region44
    $region43: #{decoder_block_forward.4} parent=5 // pred_region
      %s383 = ssub.s32 %s11, 2
      // Predicated region
      $region45: #{decoder_block_forward.4} parent=43 // pred_check
        %p384 = pneg %p124
      $region46: #{decoder_block_forward.4} parent=43 // pred_check_branch
        %386 = sbr.rel (%p384) target = $region48
      $region47: #{decoder_block_forward.4} parent=43 // pred_region
        %s387 = sadd.s32 %s22, %s23
        %s388 = smul.u32 2, %s387
        %p389 = scmp.lt.s32.totalorder %s388, 3
        %s390 = scalar_select %p389, %s388, 3
        %s391 = smul.addr %s390, 4
        %s392 = scalar_lea.vmem %s3, %s391
      $region48: #{decoder_block_forward.4} parent=43 // pred_fallthru
        _
      // Predicated region
      $region49: #{decoder_block_forward.4} parent=43 // pred_check
        %p393 = pneg %p152
      $region50: #{decoder_block_forward.4} parent=43 // pred_check_branch
        %395 = sbr.rel (%p393) target = $region52
      $region51: #{decoder_block_forward.4} parent=43 // pred_region
        %s396 = sadd.s32 %s22, %s23
        %p397 = scmp.lt.s32.totalorder %s396, 1
        %s398 = scalar_select %p397, %s396, 1
        %s399 = smul.addr %s398, 4
        %s400 = scalar_lea.vmem %s4, %s399
      $region52: #{decoder_block_forward.4} parent=43 // pred_fallthru
        _
    $region44: #{decoder_block_forward.4} parent=5 // pred_fallthru
      _
  $region6: #{decoder_block_forward.4} parent=0 // loop_footer
    %s15 = sadd.s32 1, %s11
  $region7: #{decoder_block_forward.4} parent=0 // loop_footer_branch
    %10 = sbr.rel target = $region3
  $region8: #{decoder_block_forward.4} parent=0 // loop_exit
    _

// kernel: mul.24
$region0: #{mul.24}
  #allocation0 [shape = 's32[1]{0}', space=sflag, size = 0x4, scoped, tag = 'scoped memory for mul.24']
  %s0 = inlined_call_operand.vmem [shape: f32[32,1], index: 0, kind: input, shape index: {}]
  %s1 = inlined_call_operand.vmem [shape: f32[32,1], index: 1, kind: input, shape index: {}]
  %s2 = inlined_call_operand.vmem [shape: f32[32,1], index: 2, kind: output, shape index: {}]
  %v3 = vld [vmem:[%s0] sm:$0x1]
  %v4 = vld [vmem:[%s1] sm:$0x1]
  %5 = xla_tuple %v3, %v4
  %6 = xla_tuple %5
  %v7 = vmul.f32 %v3, %v4
  %8 = xla_tuple %v7
  %9 = vst [vmem:[%s2] sm:$0x1] %v7

// kernel: decoder_block_forward.7
$region0: #{decoder_block_forward.7}
  #allocation0 [shape = 'u32[]', space=smem, size = 0x4, offset = 0x4, fixed_abs, tag = 'smem constant byte address 0x4 - core index']
  #allocation1 [shape = 'u32[144,128]{1,0:T(1,128)}', space=vmem, size = 0x12000, scoped, tag = 'internal scratch']
  %s0 = inlined_call_operand.vmem [shape: f32[16,512], index: 0, kind: input, shape index: {}]
  %s1 = inlined_call_operand.vmem [shape: f32[16,1], index: 1, kind: input, shape index: {}]
  %s2 = inlined_call_operand.vmem [shape: f32[16,1], index: 2, kind: input, shape index: {}]
  %s3 = inlined_call_operand.vmem [shape: f32[32,16], index: 3, kind: input, shape index: {}]
  %s4 = inlined_call_operand.vmem [shape: f32[32,1], index: 4, kind: input, shape index: {}]
  %s5 = inlined_call_operand.vmem [shape: f32[32,512], index: 5, kind: output, shape index: {}]
  %s6 = sld [smem:[#allocation0]]
  $region95: #{decoder_block_forward.7} parent=0
    _
  %s8 = ssub.s32 1, %s6
  %s9 = scalar_select 0, %s8, %s6
  $region1: #{decoder_block_forward.7} parent=0
    #allocation2 [shape = 'u8[32768]{0}', space=vmem, size = 0x8000, scoped, tag = 'input window, operand 0']
    #allocation3 [shape = 'u8[65536]{0}', space=vmem, size = 0x10000, scoped, tag = 'output window, operand 0']
    loop: start=0, step=1, limit=4
    $region2: #{decoder_block_forward.7} parent=1 // loop_pre_header
      _
    $region3: #{decoder_block_forward.7} parent=1 // loop_header
      %s11 = sphi 0, %s15
      %p12 = scmp.ge.s32.totalorder %s11, 4
      %s21 = sphi 0, %s23
      %s24 = sphi 0, %s21
      %s25 = sphi 0, %s24
      %s41 = sphi 0, %s25
      %s45 = sphi 0, %s45
      %s47 = sphi 0, %s45
      %s48 = sphi 0, %s47
      %s62 = sphi 0, %s48
      %s66 = sphi 0, %s66
      %s68 = sphi 0, %s66
      %s69 = sphi 0, %s68
      %s83 = sphi 0, %s69
      %s87 = sphi 0, %s87
      %s89 = sphi 0, %s87
      %s90 = sphi 0, %s89
      %s104 = sphi 0, %s90
      %s108 = sphi 0, %s108
      %s110 = sphi 0, %s108
      %s111 = sphi 0, %s110
      %s125 = sphi 0, %s111
      %s131 = sphi 0, %s133
      %s134 = sphi 0, %s131
      %s135 = sphi 0, %s134
      %s151 = sphi 0, %s135
    $region4: #{decoder_block_forward.7} parent=1 // loop_header_branch
      %14 = sbr.rel (%p12) target = $region8
    $region5: #{decoder_block_forward.7} parent=1 // loop_body
      %s16 = ssub.s32 %s11, 1
      %s17 = ssub.s32 %s11, 2
      %s18 = sadd.s32 %s11, 1
      %s19 = ssub.s32 %s11, %s18
      %p20 = scmp.eq.s32.totalorder %s19, 0
      %s22 = sadd.s32 %s21, 1
      %s23 = scalar_select %p20, %s21, %s22
      %p26 = pneg %p20
      %p27 = scmp.eq.s32.totalorder %s11, 1
      %p28 = por %p26, %p27
      %p29 = scmp.ne.s32.totalorder %s21, %s24
      %p30 = scmp.eq.s32.totalorder %s11, 0
      %p31 = por %p29, %p30
      %p32 = scmp.ne.s32.totalorder %s21, %s24
      %p33 = scmp.eq.s32.totalorder %s16, 1
      %p34 = por %p32, %p33
      %p35 = scmp.ne.s32.totalorder %s24, %s25
      %p36 = scmp.eq.s32.totalorder %s16, 0
      %p37 = por %p35, %p36
      %p38 = scmp.ne.s32.totalorder %s24, %s25
      %p39 = scmp.eq.s32.totalorder %s17, 1
      %p40 = por %p38, %p39
      %p42 = scmp.ne.s32.totalorder %s25, %s41
      %p43 = scmp.eq.s32.totalorder %s17, 0
      %p44 = por %p42, %p43
      %s46 = sadd.s32 %s45, 1
      %p49 = scmp.eq.s32.totalorder %s11, 1
      %p50 = scmp.ne.s32.totalorder %s45, %s47
      %p51 = scmp.eq.s32.totalorder %s11, 0
      %p52 = por %p50, %p51
      %p53 = scmp.ne.s32.totalorder %s45, %s47
      %p54 = scmp.eq.s32.totalorder %s16, 1
      %p55 = por %p53, %p54
      %p56 = scmp.ne.s32.totalorder %s47, %s48
      %p57 = scmp.eq.s32.totalorder %s16, 0
      %p58 = por %p56, %p57
      %p59 = scmp.ne.s32.totalorder %s47, %s48
      %p60 = scmp.eq.s32.totalorder %s17, 1
      %p61 = por %p59, %p60
      %p63 = scmp.ne.s32.totalorder %s48, %s62
      %p64 = scmp.eq.s32.totalorder %s17, 0
      %p65 = por %p63, %p64
      %s67 = sadd.s32 %s66, 1
      %p70 = scmp.eq.s32.totalorder %s11, 1
      %p71 = scmp.ne.s32.totalorder %s66, %s68
      %p72 = scmp.eq.s32.totalorder %s11, 0
      %p73 = por %p71, %p72
      %p74 = scmp.ne.s32.totalorder %s66, %s68
      %p75 = scmp.eq.s32.totalorder %s16, 1
      %p76 = por %p74, %p75
      %p77 = scmp.ne.s32.totalorder %s68, %s69
      %p78 = scmp.eq.s32.totalorder %s16, 0
      %p79 = por %p77, %p78
      %p80 = scmp.ne.s32.totalorder %s68, %s69
      %p81 = scmp.eq.s32.totalorder %s17, 1
      %p82 = por %p80, %p81
      %p84 = scmp.ne.s32.totalorder %s69, %s83
      %p85 = scmp.eq.s32.totalorder %s17, 0
      %p86 = por %p84, %p85
      %s88 = sadd.s32 %s87, 1
      %p91 = scmp.eq.s32.totalorder %s11, 1
      %p92 = scmp.ne.s32.totalorder %s87, %s89
      %p93 = scmp.eq.s32.totalorder %s11, 0
      %p94 = por %p92, %p93
      %p95 = scmp.ne.s32.totalorder %s87, %s89
      %p96 = scmp.eq.s32.totalorder %s16, 1
      %p97 = por %p95, %p96
      %p98 = scmp.ne.s32.totalorder %s89, %s90
      %p99 = scmp.eq.s32.totalorder %s16, 0
      %p100 = por %p98, %p99
      %p101 = scmp.ne.s32.totalorder %s89, %s90
      %p102 = scmp.eq.s32.totalorder %s17, 1
      %p103 = por %p101, %p102
      %p105 = scmp.ne.s32.totalorder %s90, %s104
      %p106 = scmp.eq.s32.totalorder %s17, 0
      %p107 = por %p105, %p106
      %s109 = sadd.s32 %s108, 1
      %p112 = scmp.eq.s32.totalorder %s11, 1
      %p113 = scmp.ne.s32.totalorder %s108, %s110
      %p114 = scmp.eq.s32.totalorder %s11, 0
      %p115 = por %p113, %p114
      %p116 = scmp.ne.s32.totalorder %s108, %s110
      %p117 = scmp.eq.s32.totalorder %s16, 1
      %p118 = por %p116, %p117
      %p119 = scmp.ne.s32.totalorder %s110, %s111
      %p120 = scmp.eq.s32.totalorder %s16, 0
      %p121 = por %p119, %p120
      %p122 = scmp.ne.s32.totalorder %s110, %s111
      %p123 = scmp.eq.s32.totalorder %s17, 1
      %p124 = por %p122, %p123
      %p126 = scmp.ne.s32.totalorder %s111, %s125
      %p127 = scmp.eq.s32.totalorder %s17, 0
      %p128 = por %p126, %p127
      %s129 = ssub.s32 %s11, %s18
      %p130 = scmp.eq.s32.totalorder %s129, 0
      %s132 = sadd.s32 %s131, 1
      %s133 = scalar_select %p130, %s131, %s132
      %p136 = pneg %p130
      %p137 = scmp.eq.s32.totalorder %s11, 1
      %p138 = por %p136, %p137
      %p139 = scmp.ne.s32.totalorder %s131, %s134
      %p140 = scmp.eq.s32.totalorder %s11, 0
      %p141 = por %p139, %p140
      %p142 = scmp.ne.s32.totalorder %s131, %s134
      %p143 = scmp.eq.s32.totalorder %s16, 1
      %p144 = por %p142, %p143
      %p145 = scmp.ne.s32.totalorder %s134, %s135
      %p146 = scmp.eq.s32.totalorder %s16, 0
      %p147 = por %p145, %p146
      %p148 = scmp.ne.s32.totalorder %s134, %s135
      %p149 = scmp.eq.s32.totalorder %s17, 1
      %p150 = por %p148, %p149
      %p152 = scmp.ne.s32.totalorder %s135, %s151
      %p153 = scmp.eq.s32.totalorder %s17, 0
      %p154 = por %p152, %p153
      %p155 = scmp.le.s32.totalorder 1, %s11
      %p156 = scmp.lt.s32.totalorder %s11, 3
      %p157 = pnand %p155, %p156
      %p158 = pneg %p157
      // Predicated region
      $region9: #{decoder_block_forward.7} parent=5 // pred_check
        _
      $region10: #{decoder_block_forward.7} parent=5 // pred_check_branch
        %160 = sbr.rel (%p157) target = $region12
      $region11: #{decoder_block_forward.7} parent=5 // pred_region
        %s161 = ssub.s32 %s11, 1
        // Predicated region
        $region13: #{decoder_block_forward.7} parent=11 // pred_check
          %p162 = pneg %p58
        $region14: #{decoder_block_forward.7} parent=11 // pred_check_branch
          %164 = sbr.rel (%p162) target = $region16
        $region15: #{decoder_block_forward.7} parent=11 // pred_region
          _
        $region16: #{decoder_block_forward.7} parent=11 // pred_fallthru
          _
        // Predicated region
        $region17: #{decoder_block_forward.7} parent=11 // pred_check
          %p165 = pneg %p79
        $region18: #{decoder_block_forward.7} parent=11 // pred_check_branch
          %167 = sbr.rel (%p165) target = $region20
        $region19: #{decoder_block_forward.7} parent=11 // pred_region
          _
        $region20: #{decoder_block_forward.7} parent=11 // pred_fallthru
          _
        // Predicated region
        $region21: #{decoder_block_forward.7} parent=11 // pred_check
          %p168 = pneg %p100
        $region22: #{decoder_block_forward.7} parent=11 // pred_check_branch
          %170 = sbr.rel (%p168) target = $region24
        $region23: #{decoder_block_forward.7} parent=11 // pred_region
          _
        $region24: #{decoder_block_forward.7} parent=11 // pred_fallthru
          _
        // Predicated region
        $region25: #{decoder_block_forward.7} parent=11 // pred_check
          %p171 = pneg %p121
        $region26: #{decoder_block_forward.7} parent=11 // pred_check_branch
          %173 = sbr.rel (%p171) target = $region28
        $region27: #{decoder_block_forward.7} parent=11 // pred_region
          _
        $region28: #{decoder_block_forward.7} parent=11 // pred_fallthru
          _
      $region12: #{decoder_block_forward.7} parent=5 // pred_fallthru
        _
      %p174 = scmp.lt.s32.totalorder %s11, 2
      // Predicated region
      $region29: #{decoder_block_forward.7} parent=5 // pred_check
        %p175 = pneg %p174
      $region30: #{decoder_block_forward.7} parent=5 // pred_check_branch
        %177 = sbr.rel (%p175) target = $region32
      $region31: #{decoder_block_forward.7} parent=5 // pred_region
        // Predicated region
        $region33: #{decoder_block_forward.7} parent=31 // pred_check
          %p178 = pneg %p31
        $region34: #{decoder_block_forward.7} parent=31 // pred_check_branch
          %180 = sbr.rel (%p178) target = $region36
        $region35: #{decoder_block_forward.7} parent=31 // pred_region
          %s181 = sand.u32 %s21, 1
          %s182 = sand.u32 %s21, 1
          %s183 = smul.addr %s182, 32
          %s184 = scalar_lea.vmem [#allocation2], %s183
          %s185 = smul.u32 2, %s11
          %s186 = smul.addr %s185, 8
          %s187 = scalar_lea.vmem %s0, %s186
          // Predicated region
          $region37: #{decoder_block_forward.7} parent=35 // pred_check
            _
          $region38: #{decoder_block_forward.7} parent=35 // pred_check_branch
            %189 = sbr.rel (0) target = $region40
          $region39: #{decoder_block_forward.7} parent=35 // pred_region
            // Predicated region
            $region41: #{decoder_block_forward.7} parent=39 // pred_check
              _
            $region42: #{decoder_block_forward.7} parent=39 // pred_check_branch
              %191 = sbr.rel (0) target = $region44
            $region43: #{decoder_block_forward.7} parent=39 // pred_region
              loop: start=0, step=1, limit=1
              $region45: #{decoder_block_forward.7} parent=43 // loop_pre_header
                _
              $region46: #{decoder_block_forward.7} parent=43 // loop_header
                %s193 = sphi 0, %s197
                %p194 = scmp.ge.s32.totalorder %s193, 1
                %s198 = sphi %s187, %s187
                %s199 = sphi %s184, %s184
              $region47: #{decoder_block_forward.7} parent=43 // loop_header_branch
                %196 = sbr.rel (%p194) target = $region51
              $region48: #{decoder_block_forward.7} parent=43 // loop_body
                %v200 = vld [vmem:[%s198] sm:$0xff]
                %201 = vst [vmem:[%s199] sm:$0xff] %v200
                %v202 = vld [vmem:[%s198 + $0x8] sm:$0xff]
                %203 = vst [vmem:[%s199 + $0x8] sm:$0xff] %v202
                %v204 = vld [vmem:[%s198 + $0x20] sm:$0xff]
                %205 = vst [vmem:[%s199 + $0x10] sm:$0xff] %v204
                %v206 = vld [vmem:[%s198 + $0x28] sm:$0xff]
                %207 = vst [vmem:[%s199 + $0x18] sm:$0xff] %v206
              $region49: #{decoder_block_forward.7} parent=43 // loop_footer
                %s197 = sadd.s32 1, %s193
              $region50: #{decoder_block_forward.7} parent=43 // loop_footer_branch
                %192 = sbr.rel target = $region46
              $region51: #{decoder_block_forward.7} parent=43 // loop_exit
                _
            $region44: #{decoder_block_forward.7} parent=39 // pred_fallthru
              _
            // Predicated region
            $region52: #{decoder_block_forward.7} parent=39 // pred_check
              _
            $region53: #{decoder_block_forward.7} parent=39 // pred_check_branch
              %209 = sbr.rel target = $region55
            $region54: #{decoder_block_forward.7} parent=39 // pred_region
              _
            $region55: #{decoder_block_forward.7} parent=39 // pred_fallthru
              _
          $region40: #{decoder_block_forward.7} parent=35 // pred_fallthru
            _
          %210 = vnop
        $region36: #{decoder_block_forward.7} parent=31 // pred_fallthru
          _
      $region32: #{decoder_block_forward.7} parent=5 // pred_fallthru
        _
      %p211 = scmp.le.s32.totalorder 1, %s11
      %p212 = scmp.lt.s32.totalorder %s11, 3
      %p213 = pnand %p211, %p212
      %p214 = pneg %p213
      // Predicated region
      $region56: #{decoder_block_forward.7} parent=5 // pred_check
        _
      $region57: #{decoder_block_forward.7} parent=5 // pred_check_branch
        %216 = sbr.rel (%p213) target = $region59
      $region58: #{decoder_block_forward.7} parent=5 // pred_region
        %s217 = ssub.s32 %s11, 1
        %s218 = sand.u32 %s24, 1
        %s219 = sand.u32 %s24, 1
        %s220 = smul.addr %s219, 32
        %s221 = scalar_lea.vmem [#allocation2], %s220
        // Predicated region
        $region60: #{decoder_block_forward.7} parent=58 // pred_check
          %p222 = pneg %p37
        $region61: #{decoder_block_forward.7} parent=58 // pred_check_branch
          %224 = sbr.rel (%p222) target = $region63
        $region62: #{decoder_block_forward.7} parent=58 // pred_region
          _
        $region63: #{decoder_block_forward.7} parent=58 // pred_fallthru
          _
        %s225 = sand.u32 %s24, 1
        %s226 = sand.u32 %s24, 1
        %s227 = smul.addr %s226, 32
        %s228 = scalar_lea.vmem [#allocation2], %s227
        %p229 = pneg %p37
        %p230 = pneg %p34
        %p231 = pneg %p58
        %p232 = pneg %p55
        %p233 = pneg %p79
        %p234 = pneg %p76
        %p235 = pneg %p100
        %p236 = pneg %p97
        %p237 = pneg %p121
        %p238 = pneg %p118
        %p239 = pneg %p147
        %p240 = pneg %p144
        %s241 = sand.u32 %s134, 1
        %s242 = sand.u32 %s134, 1
        %s243 = smul.addr %s242, 64
        %s244 = scalar_lea.vmem [#allocation3], %s243
        %s245 = smul.u32 2, %s16
        %s246 = smul.u32 2, %s16
        %v247 = vld [vmem:[%s221] sm:$0xff]
        %v248 = vld [vmem:[%s221 + $0x8] sm:$0xff]
        %v249 = vld [vmem:[%s221 + $0x10] sm:$0xff]
        %v250 = vld [vmem:[%s221 + $0x18] sm:$0xff]
        %v251 = vld [vmem:[%s1] sm:$0xff]
        %v252 = vld [vmem:[%s1 + $0x8] sm:$0xff]
        %254 = vset.pattern.permute.xlu0 0
        %255 = vperm.xlu0 %254, %v251
        %v256 = vpop.permute.xlu0 %255
        %259 = vset.pattern.permute.xlu0 0
        %260 = vperm.xlu0 %259, %v252
        %v261 = vpop.permute.xlu0 %260
        %v263 = vmul.f32 %v247, %v256
        %v264 = vmul.f32 %v248, %v256
        %v265 = vmul.f32 %v249, %v261
        %v266 = vmul.f32 %v250, %v261
        %v267 = vld [vmem:[%s2] sm:$0xff]
        %v268 = vld [vmem:[%s2 + $0x8] sm:$0xff]
        %270 = vset.pattern.permute.xlu0 0
        %271 = vperm.xlu0 %270, %v267
        %v272 = vpop.permute.xlu0 %271
        %275 = vset.pattern.permute.xlu0 0
        %276 = vperm.xlu0 %275, %v268
        %v277 = vpop.permute.xlu0 %276
        %v279 = vadd.f32 %v263, %v272
        %v280 = vadd.f32 %v264, %v272
        %v281 = vadd.f32 %v265, %v277
        %v282 = vadd.f32 %v266, %v277
        %v283 = vmax.f32 %v279, 0.0
        %v284 = vmax.f32 %v280, 0.0
        %v285 = vmax.f32 %v281, 0.0
        %v286 = vmax.f32 %v282, 0.0
        %v287 = vld [vmem:[%s3] sm:$0xff]
        %v288 = vld [vmem:[%s3 + $0x8] sm:$0xff]
        %v289 = vld [vmem:[%s3 + $0x10] sm:$0xff]
        %v290 = vld [vmem:[%s3 + $0x18] sm:$0xff]
        %v291 = vld [vmem:[%s4] sm:$0xff]
        %v292 = vld [vmem:[%s4 + $0x8] sm:$0xff]
        %v293 = vld [vmem:[%s4 + $0x10] sm:$0xff]
        %v294 = vld [vmem:[%s4 + $0x18] sm:$0xff]
        %296 = vset.pattern.permute.xlu0 0
        %297 = vperm.xlu0 %296, %v291
        %v298 = vpop.permute.xlu0 %297
        %301 = vset.pattern.permute.xlu0 0
        %302 = vperm.xlu0 %301, %v292
        %v303 = vpop.permute.xlu0 %302
        %306 = vset.pattern.permute.xlu0 0
        %307 = vperm.xlu0 %306, %v293
        %v308 = vpop.permute.xlu0 %307
        %311 = vset.pattern.permute.xlu0 0
        %312 = vperm.xlu0 %311, %v294
        %v313 = vpop.permute.xlu0 %312
        %vm315 = vcmask 130048
        %v317 = vsel %vm315, %v287, 0
        %v320 = vsel %vm315, %v288, 0
        %v323 = vsel %vm315, %v289, 0
        %v326 = vsel %vm315, %v290, 0
        %328 = vmatprep.subr.mxu0 %v284
        %329 = vmatpush1.msra.mxu0 %v283
        %330 = vmatprep.subr.mxu0 %v286
        %331 = vmatpush1.msra.mxu0 %v285
        %332 = vmatprep.subr.mxu0 0.0
        %333 = vmatpush1.msra.mxu0 0.0
        %334 = vmatprep.subr.mxu0 0.0
        %335 = vmatpush1.msra.mxu0 0.0
        %336 = vmatprep.subr.mxu0 0.0
        %337 = vmatpush1.msra.mxu0 0.0
        %338 = vmatprep.subr.mxu0 0.0
        %339 = vmatpush1.msra.mxu0 0.0
        %340 = vmatprep.subr.mxu0 0.0
        %341 = vmatpush1.msra.mxu0 0.0
        %342 = vmatprep.subr.mxu0 0.0
        %343 = vmatpush1.msra.mxu0 0.0
        %344 = vmatprep.subr.mxu0 0.0
        %345 = vmatpush1.msra.mxu0 0.0
        %346 = vmatprep.subr.mxu0 0.0
        %347 = vmatpush1.msra.mxu0 0.0
        %348 = vmatprep.subr.mxu0 0.0
        %349 = vmatpush1.msra.mxu0 0.0
        %350 = vmatprep.subr.mxu0 0.0
        %351 = vmatpush1.msra.mxu0 0.0
        %352 = vmatprep.subr.mxu0 0.0
        %353 = vmatpush1.msra.mxu0 0.0
        %354 = vmatprep.subr.mxu0 0.0
        %355 = vmatpush1.msra.mxu0 0.0
        %356 = vmatprep.subr.mxu0 0.0
        %357 = vmatpush1.msra.mxu0 0.0
        %358 = vmatprep.subr.mxu0 0.0
        %359 = vmatpush1.msra.mxu0 0.0
        %360 = vmatprep.subr.mxu0 0.0
        %361 = vmatpush1.msra.mxu0 0.0
        %362 = vmatprep.subr.mxu0 0.0
        %363 = vmatpush1.msra.mxu0 0.0
        %364 = vmatprep.subr.mxu0 0.0
        %365 = vmatpush1.msra.mxu0 0.0
        %366 = vmatprep.subr.mxu0 0.0
        %367 = vmatpush1.msra.mxu0 0.0
        %368 = vmatprep.subr.mxu0 0.0
        %369 = vmatpush1.msra.mxu0 0.0
        %370 = vmatprep.subr.mxu0 0.0
        %371 = vmatpush1.msra.mxu0 0.0
        %372 = vmatprep.subr.mxu0 0.0
        %373 = vmatpush1.msra.mxu0 0.0
        %374 = vmatprep.subr.mxu0 0.0
        %375 = vmatpush1.msra.mxu0 0.0
        %376 = vmatprep.subr.mxu0 0.0
        %377 = vmatpush1.msra.mxu0 0.0
        %378 = vmatprep.subr.mxu0 0.0
        %379 = vmatpush1.msra.mxu0 0.0
        %380 = vmatprep.subr.mxu0 0.0
        %381 = vmatpush1.msra.mxu0 0.0
        %382 = vmatprep.subr.mxu0 0.0
        %383 = vmatpush1.msra.mxu0 0.0
        %384 = vmatprep.subr.mxu0 0.0
        %385 = vmatpush1.msra.mxu0 0.0
        %386 = vmatprep.subr.mxu0 0.0
        %387 = vmatpush1.msra.mxu0 0.0
        %388 = vmatprep.subr.mxu0 0.0
        %389 = vmatpush1.msra.mxu0 0.0
        %390 = vmatprep.subr.mxu0 0.0
        %391 = vmatpush1.msra.mxu0 0.0
        %392 = vmatprep.mubr.f32.mxu0 0.0
        %393 = vmatmul.mubr.f32.gmra.mrb[0].mxu0 %v317
        %v394 = vpop.f32.mrb[0].mxu0
        %v395 = vadd.f32 %v298, %v394
        %v396 = vpop.f32.mrb[0].mxu0
        %v397 = vadd.f32 %v298, %v396
        %398 = vmatprep.mubr.f32.mxu0 0.0
        %399 = vmatmul.mubr.f32.gmra.mrb[0].mxu0 %v320
        %v400 = vpop.f32.mrb[0].mxu0
        %v401 = vadd.f32 %v303, %v400
        %v402 = vpop.f32.mrb[0].mxu0
        %v403 = vadd.f32 %v303, %v402
        %404 = vmatprep.mubr.f32.mxu0 0.0
        %405 = vmatmul.mubr.f32.gmra.mrb[0].mxu0 %v323
        %v406 = vpop.f32.mrb[0].mxu0
        %v407 = vadd.f32 %v308, %v406
        %v408 = vpop.f32.mrb[0].mxu0
        %v409 = vadd.f32 %v308, %v408
        %410 = vmatprep.mubr.f32.mxu0 0.0
        %411 = vmatmul.mubr.f32.gmra.mrb[0].mxu0 %v326
        %v412 = vpop.f32.mrb[0].mxu0
        %v413 = vadd.f32 %v313, %v412
        %v414 = vpop.f32.mrb[0].mxu0
        %v415 = vadd.f32 %v313, %v414
        %416 = vdwg.mxu0
        %v417 = vmax.f32 %v395, 0.0
        %v418 = vmax.f32 %v397, 0.0
        %v419 = vmax.f32 %v401, 0.0
        %v420 = vmax.f32 %v403, 0.0
        %v421 = vmax.f32 %v407, 0.0
        %v422 = vmax.f32 %v409, 0.0
        %v423 = vmax.f32 %v413, 0.0
        %v424 = vmax.f32 %v415, 0.0
        %425 = vst [vmem:[%s244] sm:$0xff] %v417
        %426 = vst [vmem:[%s244 + $0x8] sm:$0xff] %v418
        %427 = vst [vmem:[%s244 + $0x10] sm:$0xff] %v419
        %428 = vst [vmem:[%s244 + $0x18] sm:$0xff] %v420
        %429 = vst [vmem:[%s244 + $0x20] sm:$0xff] %v421
        %430 = vst [vmem:[%s244 + $0x28] sm:$0xff] %v422
        %431 = vst [vmem:[%s244 + $0x30] sm:$0xff] %v423
        %432 = vst [vmem:[%s244 + $0x38] sm:$0xff] %v424
        %s433 = sand.u32 %s134, 1
        %s434 = sand.u32 %s134, 1
        %s435 = smul.addr %s434, 64
        %s436 = scalar_lea.vmem [#allocation3], %s435
        // Predicated region
        $region64: #{decoder_block_forward.7} parent=58 // pred_check
          %p437 = pneg %p144
        $region65: #{decoder_block_forward.7} parent=58 // pred_check_branch
          %439 = sbr.rel (%p437) target = $region67
        $region66: #{decoder_block_forward.7} parent=58 // pred_region
          %s440 = smul.u32 2, %s16
          %s441 = smul.addr %s440, 8
          %s442 = scalar_lea.vmem %s5, %s441
          // Predicated region
          $region68: #{decoder_block_forward.7} parent=66 // pred_check
            _
          $region69: #{decoder_block_forward.7} parent=66 // pred_check_branch
            %444 = sbr.rel (0) target = $region71
          $region70: #{decoder_block_forward.7} parent=66 // pred_region
            // Predicated region
            $region72: #{decoder_block_forward.7} parent=70 // pred_check
              _
            $region73: #{decoder_block_forward.7} parent=70 // pred_check_branch
              %446 = sbr.rel (0) target = $region75
            $region74: #{decoder_block_forward.7} parent=70 // pred_region
              loop: start=0, step=1, limit=1
              $region76: #{decoder_block_forward.7} parent=74 // loop_pre_header
                _
              $region77: #{decoder_block_forward.7} parent=74 // loop_header
                %s448 = sphi 0, %s452
                %p449 = scmp.ge.s32.totalorder %s448, 1
                %s453 = sphi %s436, %s436
                %s454 = sphi %s442, %s442
              $region78: #{decoder_block_forward.7} parent=74 // loop_header_branch
                %451 = sbr.rel (%p449) target = $region82
              $region79: #{decoder_block_forward.7} parent=74 // loop_body
                %v455 = vld [vmem:[%s453] sm:$0xff]
                %456 = vst [vmem:[%s454] sm:$0xff] %v455
                %v457 = vld [vmem:[%s453 + $0x8] sm:$0xff]
                %458 = vst [vmem:[%s454 + $0x8] sm:$0xff] %v457
                %v459 = vld [vmem:[%s453 + $0x10] sm:$0xff]
                %460 = vst [vmem:[%s454 + $0x20] sm:$0xff] %v459
                %v461 = vld [vmem:[%s453 + $0x18] sm:$0xff]
                %462 = vst [vmem:[%s454 + $0x28] sm:$0xff] %v461
                %v463 = vld [vmem:[%s453 + $0x20] sm:$0xff]
                %464 = vst [vmem:[%s454 + $0x40] sm:$0xff] %v463
                %v465 = vld [vmem:[%s453 + $0x28] sm:$0xff]
                %466 = vst [vmem:[%s454 + $0x48] sm:$0xff] %v465
                %v467 = vld [vmem:[%s453 + $0x30] sm:$0xff]
                %468 = vst [vmem:[%s454 + $0x60] sm:$0xff] %v467
                %v469 = vld [vmem:[%s453 + $0x38] sm:$0xff]
                %470 = vst [vmem:[%s454 + $0x68] sm:$0xff] %v469
              $region80: #{decoder_block_forward.7} parent=74 // loop_footer
                %s452 = sadd.s32 1, %s448
              $region81: #{decoder_block_forward.7} parent=74 // loop_footer_branch
                %447 = sbr.rel target = $region77
              $region82: #{decoder_block_forward.7} parent=74 // loop_exit
                _
            $region75: #{decoder_block_forward.7} parent=70 // pred_fallthru
              _
            // Predicated region
            $region83: #{decoder_block_forward.7} parent=70 // pred_check
              _
            $region84: #{decoder_block_forward.7} parent=70 // pred_check_branch
              %472 = sbr.rel target = $region86
            $region85: #{decoder_block_forward.7} parent=70 // pred_region
              _
            $region86: #{decoder_block_forward.7} parent=70 // pred_fallthru
              _
          $region71: #{decoder_block_forward.7} parent=66 // pred_fallthru
            _
          %473 = vnop
        $region67: #{decoder_block_forward.7} parent=58 // pred_fallthru
          _
      $region59: #{decoder_block_forward.7} parent=5 // pred_fallthru
        _
      %p474 = scmp.le.s32.totalorder 2, %s11
      // Predicated region
      $region87: #{decoder_block_forward.7} parent=5 // pred_check
        %p475 = pneg %p474
      $region88: #{decoder_block_forward.7} parent=5 // pred_check_branch
        %477 = sbr.rel (%p475) target = $region90
      $region89: #{decoder_block_forward.7} parent=5 // pred_region
        %s478 = ssub.s32 %s11, 2
        // Predicated region
        $region91: #{decoder_block_forward.7} parent=89 // pred_check
          %p479 = pneg %p150
        $region92: #{decoder_block_forward.7} parent=89 // pred_check_branch
          %481 = sbr.rel (%p479) target = $region94
        $region93: #{decoder_block_forward.7} parent=89 // pred_region
          %s482 = sand.u32 %s135, 1
          %s483 = sand.u32 %s135, 1
          %s484 = smul.addr %s483, 64
          %s485 = scalar_lea.vmem [#allocation3], %s484
        $region94: #{decoder_block_forward.7} parent=89 // pred_fallthru
          _
      $region90: #{decoder_block_forward.7} parent=5 // pred_fallthru
        _
    $region6: #{decoder_block_forward.7} parent=1 // loop_footer
      %s15 = sadd.s32 1, %s11
    $region7: #{decoder_block_forward.7} parent=1 // loop_footer_branch
      %10 = sbr.rel target = $region3
    $region8: #{decoder_block_forward.7} parent=1 // loop_exit
      _

// kernel: decoder_block_forward.6
$region0: #{decoder_block_forward.6}
  #allocation0 [shape = 'u32[]', space=smem, size = 0x4, offset = 0x4, fixed_abs, tag = 'smem constant byte address 0x4 - core index']
  #allocation1 [shape = 'u32[144,128]{1,0:T(1,128)}', space=vmem, size = 0x12000, scoped, tag = 'internal scratch']
  %s0 = inlined_call_operand.vmem [shape: f32[16,512], index: 0, kind: input, shape index: {}]
  %s1 = inlined_call_operand.vmem [shape: f32[16,1], index: 1, kind: input, shape index: {}]
  %s2 = inlined_call_operand.vmem [shape: f32[16,1], index: 2, kind: input, shape index: {}]
  %s3 = inlined_call_operand.vmem [shape: f32[32,16], index: 3, kind: input, shape index: {}]
  %s4 = inlined_call_operand.vmem [shape: f32[32,1], index: 4, kind: input, shape index: {}]
  %s5 = inlined_call_operand.vmem [shape: f32[2,32,2], index: 5, kind: output, shape index: {}]
  %s6 = sld [smem:[#allocation0]]
  $region76: #{decoder_block_forward.6} parent=0
    _
  %s8 = ssub.s32 1, %s6
  %s9 = scalar_select 0, %s8, %s6
  $region1: #{decoder_block_forward.6} parent=0
    #allocation2 [shape = 'u8[32768]{0}', space=vmem, size = 0x8000, scoped, tag = 'input window, operand 0']
    loop: start=0, step=1, limit=4
    $region2: #{decoder_block_forward.6} parent=1 // loop_pre_header
      _
    $region3: #{decoder_block_forward.6} parent=1 // loop_header
      %s11 = sphi 0, %s15
      %p12 = scmp.ge.s32.totalorder %s11, 4
      %s21 = sphi 0, %s23
      %s24 = sphi 0, %s21
      %s25 = sphi 0, %s24
      %s41 = sphi 0, %s25
      %s45 = sphi 0, %s45
      %s47 = sphi 0, %s45
      %s48 = sphi 0, %s47
      %s62 = sphi 0, %s48
      %s66 = sphi 0, %s66
      %s68 = sphi 0, %s66
      %s69 = sphi 0, %s68
      %s83 = sphi 0, %s69
      %s87 = sphi 0, %s87
      %s89 = sphi 0, %s87
      %s90 = sphi 0, %s89
      %s104 = sphi 0, %s90
      %s108 = sphi 0, %s108
      %s110 = sphi 0, %s108
      %s111 = sphi 0, %s110
      %s125 = sphi 0, %s111
      %s131 = sphi 0, %s133
      %s134 = sphi 0, %s131
      %s135 = sphi 0, %s134
      %s151 = sphi 0, %s135
    $region4: #{decoder_block_forward.6} parent=1 // loop_header_branch
      %14 = sbr.rel (%p12) target = $region8
    $region5: #{decoder_block_forward.6} parent=1 // loop_body
      %s16 = ssub.s32 %s11, 1
      %s17 = ssub.s32 %s11, 2
      %s18 = sadd.s32 %s11, 1
      %s19 = ssub.s32 %s11, %s18
      %p20 = scmp.eq.s32.totalorder %s19, 0
      %s22 = sadd.s32 %s21, 1
      %s23 = scalar_select %p20, %s21, %s22
      %p26 = pneg %p20
      %p27 = scmp.eq.s32.totalorder %s11, 1
      %p28 = por %p26, %p27
      %p29 = scmp.ne.s32.totalorder %s21, %s24
      %p30 = scmp.eq.s32.totalorder %s11, 0
      %p31 = por %p29, %p30
      %p32 = scmp.ne.s32.totalorder %s21, %s24
      %p33 = scmp.eq.s32.totalorder %s16, 1
      %p34 = por %p32, %p33
      %p35 = scmp.ne.s32.totalorder %s24, %s25
      %p36 = scmp.eq.s32.totalorder %s16, 0
      %p37 = por %p35, %p36
      %p38 = scmp.ne.s32.totalorder %s24, %s25
      %p39 = scmp.eq.s32.totalorder %s17, 1
      %p40 = por %p38, %p39
      %p42 = scmp.ne.s32.totalorder %s25, %s41
      %p43 = scmp.eq.s32.totalorder %s17, 0
      %p44 = por %p42, %p43
      %s46 = sadd.s32 %s45, 1
      %p49 = scmp.eq.s32.totalorder %s11, 1
      %p50 = scmp.ne.s32.totalorder %s45, %s47
      %p51 = scmp.eq.s32.totalorder %s11, 0
      %p52 = por %p50, %p51
      %p53 = scmp.ne.s32.totalorder %s45, %s47
      %p54 = scmp.eq.s32.totalorder %s16, 1
      %p55 = por %p53, %p54
      %p56 = scmp.ne.s32.totalorder %s47, %s48
      %p57 = scmp.eq.s32.totalorder %s16, 0
      %p58 = por %p56, %p57
      %p59 = scmp.ne.s32.totalorder %s47, %s48
      %p60 = scmp.eq.s32.totalorder %s17, 1
      %p61 = por %p59, %p60
      %p63 = scmp.ne.s32.totalorder %s48, %s62
      %p64 = scmp.eq.s32.totalorder %s17, 0
      %p65 = por %p63, %p64
      %s67 = sadd.s32 %s66, 1
      %p70 = scmp.eq.s32.totalorder %s11, 1
      %p71 = scmp.ne.s32.totalorder %s66, %s68
      %p72 = scmp.eq.s32.totalorder %s11, 0
      %p73 = por %p71, %p72
      %p74 = scmp.ne.s32.totalorder %s66, %s68
      %p75 = scmp.eq.s32.totalorder %s16, 1
      %p76 = por %p74, %p75
      %p77 = scmp.ne.s32.totalorder %s68, %s69
      %p78 = scmp.eq.s32.totalorder %s16, 0
      %p79 = por %p77, %p78
      %p80 = scmp.ne.s32.totalorder %s68, %s69
      %p81 = scmp.eq.s32.totalorder %s17, 1
      %p82 = por %p80, %p81
      %p84 = scmp.ne.s32.totalorder %s69, %s83
      %p85 = scmp.eq.s32.totalorder %s17, 0
      %p86 = por %p84, %p85
      %s88 = sadd.s32 %s87, 1
      %p91 = scmp.eq.s32.totalorder %s11, 1
      %p92 = scmp.ne.s32.totalorder %s87, %s89
      %p93 = scmp.eq.s32.totalorder %s11, 0
      %p94 = por %p92, %p93
      %p95 = scmp.ne.s32.totalorder %s87, %s89
      %p96 = scmp.eq.s32.totalorder %s16, 1
      %p97 = por %p95, %p96
      %p98 = scmp.ne.s32.totalorder %s89, %s90
      %p99 = scmp.eq.s32.totalorder %s16, 0
      %p100 = por %p98, %p99
      %p101 = scmp.ne.s32.totalorder %s89, %s90
      %p102 = scmp.eq.s32.totalorder %s17, 1
      %p103 = por %p101, %p102
      %p105 = scmp.ne.s32.totalorder %s90, %s104
      %p106 = scmp.eq.s32.totalorder %s17, 0
      %p107 = por %p105, %p106
      %s109 = sadd.s32 %s108, 1
      %p112 = scmp.eq.s32.totalorder %s11, 1
      %p113 = scmp.ne.s32.totalorder %s108, %s110
      %p114 = scmp.eq.s32.totalorder %s11, 0
      %p115 = por %p113, %p114
      %p116 = scmp.ne.s32.totalorder %s108, %s110
      %p117 = scmp.eq.s32.totalorder %s16, 1
      %p118 = por %p116, %p117
      %p119 = scmp.ne.s32.totalorder %s110, %s111
      %p120 = scmp.eq.s32.totalorder %s16, 0
      %p121 = por %p119, %p120
      %p122 = scmp.ne.s32.totalorder %s110, %s111
      %p123 = scmp.eq.s32.totalorder %s17, 1
      %p124 = por %p122, %p123
      %p126 = scmp.ne.s32.totalorder %s111, %s125
      %p127 = scmp.eq.s32.totalorder %s17, 0
      %p128 = por %p126, %p127
      %s129 = ssub.s32 %s11, %s18
      %p130 = scmp.eq.s32.totalorder %s129, 0
      %s132 = sadd.s32 %s131, 1
      %s133 = scalar_select %p130, %s131, %s132
      %p136 = pneg %p130
      %p137 = scmp.eq.s32.totalorder %s11, 1
      %p138 = por %p136, %p137
      %p139 = scmp.ne.s32.totalorder %s131, %s134
      %p140 = scmp.eq.s32.totalorder %s11, 0
      %p141 = por %p139, %p140
      %p142 = scmp.ne.s32.totalorder %s131, %s134
      %p143 = scmp.eq.s32.totalorder %s16, 1
      %p144 = por %p142, %p143
      %p145 = scmp.ne.s32.totalorder %s134, %s135
      %p146 = scmp.eq.s32.totalorder %s16, 0
      %p147 = por %p145, %p146
      %p148 = scmp.ne.s32.totalorder %s134, %s135
      %p149 = scmp.eq.s32.totalorder %s17, 1
      %p150 = por %p148, %p149
      %p152 = scmp.ne.s32.totalorder %s135, %s151
      %p153 = scmp.eq.s32.totalorder %s17, 0
      %p154 = por %p152, %p153
      %p155 = scmp.le.s32.totalorder 1, %s11
      %p156 = scmp.lt.s32.totalorder %s11, 3
      %p157 = pnand %p155, %p156
      %p158 = pneg %p157
      // Predicated region
      $region9: #{decoder_block_forward.6} parent=5 // pred_check
        _
      $region10: #{decoder_block_forward.6} parent=5 // pred_check_branch
        %160 = sbr.rel (%p157) target = $region12
      $region11: #{decoder_block_forward.6} parent=5 // pred_region
        %s161 = ssub.s32 %s11, 1
        // Predicated region
        $region13: #{decoder_block_forward.6} parent=11 // pred_check
          %p162 = pneg %p58
        $region14: #{decoder_block_forward.6} parent=11 // pred_check_branch
          %164 = sbr.rel (%p162) target = $region16
        $region15: #{decoder_block_forward.6} parent=11 // pred_region
          _
        $region16: #{decoder_block_forward.6} parent=11 // pred_fallthru
          _
        // Predicated region
        $region17: #{decoder_block_forward.6} parent=11 // pred_check
          %p165 = pneg %p79
        $region18: #{decoder_block_forward.6} parent=11 // pred_check_branch
          %167 = sbr.rel (%p165) target = $region20
        $region19: #{decoder_block_forward.6} parent=11 // pred_region
          _
        $region20: #{decoder_block_forward.6} parent=11 // pred_fallthru
          _
        // Predicated region
        $region21: #{decoder_block_forward.6} parent=11 // pred_check
          %p168 = pneg %p100
        $region22: #{decoder_block_forward.6} parent=11 // pred_check_branch
          %170 = sbr.rel (%p168) target = $region24
        $region23: #{decoder_block_forward.6} parent=11 // pred_region
          _
        $region24: #{decoder_block_forward.6} parent=11 // pred_fallthru
          _
        // Predicated region
        $region25: #{decoder_block_forward.6} parent=11 // pred_check
          %p171 = pneg %p121
        $region26: #{decoder_block_forward.6} parent=11 // pred_check_branch
          %173 = sbr.rel (%p171) target = $region28
        $region27: #{decoder_block_forward.6} parent=11 // pred_region
          _
        $region28: #{decoder_block_forward.6} parent=11 // pred_fallthru
          _
      $region12: #{decoder_block_forward.6} parent=5 // pred_fallthru
        _
      %p174 = scmp.lt.s32.totalorder %s11, 2
      // Predicated region
      $region29: #{decoder_block_forward.6} parent=5 // pred_check
        %p175 = pneg %p174
      $region30: #{decoder_block_forward.6} parent=5 // pred_check_branch
        %177 = sbr.rel (%p175) target = $region32
      $region31: #{decoder_block_forward.6} parent=5 // pred_region
        // Predicated region
        $region33: #{decoder_block_forward.6} parent=31 // pred_check
          %p178 = pneg %p31
        $region34: #{decoder_block_forward.6} parent=31 // pred_check_branch
          %180 = sbr.rel (%p178) target = $region36
        $region35: #{decoder_block_forward.6} parent=31 // pred_region
          %s181 = sand.u32 %s21, 1
          %s182 = sand.u32 %s21, 1
          %s183 = smul.addr %s182, 32
          %s184 = scalar_lea.vmem [#allocation2], %s183
          %s185 = smul.u32 2, %s11
          %s186 = smul.addr %s185, 8
          %s187 = scalar_lea.vmem %s0, %s186
          // Predicated region
          $region37: #{decoder_block_forward.6} parent=35 // pred_check
            _
          $region38: #{decoder_block_forward.6} parent=35 // pred_check_branch
            %189 = sbr.rel (0) target = $region40
          $region39: #{decoder_block_forward.6} parent=35 // pred_region
            // Predicated region
            $region41: #{decoder_block_forward.6} parent=39 // pred_check
              _
            $region42: #{decoder_block_forward.6} parent=39 // pred_check_branch
              %191 = sbr.rel (0) target = $region44
            $region43: #{decoder_block_forward.6} parent=39 // pred_region
              loop: start=0, step=1, limit=1
              $region45: #{decoder_block_forward.6} parent=43 // loop_pre_header
                _
              $region46: #{decoder_block_forward.6} parent=43 // loop_header
                %s193 = sphi 0, %s197
                %p194 = scmp.ge.s32.totalorder %s193, 1
                %s198 = sphi %s187, %s187
                %s199 = sphi %s184, %s184
              $region47: #{decoder_block_forward.6} parent=43 // loop_header_branch
                %196 = sbr.rel (%p194) target = $region51
              $region48: #{decoder_block_forward.6} parent=43 // loop_body
                %v200 = vld [vmem:[%s198] sm:$0xff]
                %201 = vst [vmem:[%s199] sm:$0xff] %v200
                %v202 = vld [vmem:[%s198 + $0x8] sm:$0xff]
                %203 = vst [vmem:[%s199 + $0x8] sm:$0xff] %v202
                %v204 = vld [vmem:[%s198 + $0x20] sm:$0xff]
                %205 = vst [vmem:[%s199 + $0x10] sm:$0xff] %v204
                %v206 = vld [vmem:[%s198 + $0x28] sm:$0xff]
                %207 = vst [vmem:[%s199 + $0x18] sm:$0xff] %v206
              $region49: #{decoder_block_forward.6} parent=43 // loop_footer
                %s197 = sadd.s32 1, %s193
              $region50: #{decoder_block_forward.6} parent=43 // loop_footer_branch
                %192 = sbr.rel target = $region46
              $region51: #{decoder_block_forward.6} parent=43 // loop_exit
                _
            $region44: #{decoder_block_forward.6} parent=39 // pred_fallthru
              _
            // Predicated region
            $region52: #{decoder_block_forward.6} parent=39 // pred_check
              _
            $region53: #{decoder_block_forward.6} parent=39 // pred_check_branch
              %209 = sbr.rel target = $region55
            $region54: #{decoder_block_forward.6} parent=39 // pred_region
              _
            $region55: #{decoder_block_forward.6} parent=39 // pred_fallthru
              _
          $region40: #{decoder_block_forward.6} parent=35 // pred_fallthru
            _
          %210 = vnop
        $region36: #{decoder_block_forward.6} parent=31 // pred_fallthru
          _
      $region32: #{decoder_block_forward.6} parent=5 // pred_fallthru
        _
      %p211 = scmp.le.s32.totalorder 1, %s11
      %p212 = scmp.lt.s32.totalorder %s11, 3
      %p213 = pnand %p211, %p212
      %p214 = pneg %p213
      // Predicated region
      $region56: #{decoder_block_forward.6} parent=5 // pred_check
        _
      $region57: #{decoder_block_forward.6} parent=5 // pred_check_branch
        %216 = sbr.rel (%p213) target = $region59
      $region58: #{decoder_block_forward.6} parent=5 // pred_region
        %s217 = ssub.s32 %s11, 1
        %s218 = sand.u32 %s24, 1
        %s219 = sand.u32 %s24, 1
        %s220 = smul.addr %s219, 32
        %s221 = scalar_lea.vmem [#allocation2], %s220
        // Predicated region
        $region60: #{decoder_block_forward.6} parent=58 // pred_check
          %p222 = pneg %p37
        $region61: #{decoder_block_forward.6} parent=58 // pred_check_branch
          %224 = sbr.rel (%p222) target = $region63
        $region62: #{decoder_block_forward.6} parent=58 // pred_region
          _
        $region63: #{decoder_block_forward.6} parent=58 // pred_fallthru
          _
        %s225 = sand.u32 %s24, 1
        %s226 = sand.u32 %s24, 1
        %s227 = smul.addr %s226, 32
        %s228 = scalar_lea.vmem [#allocation2], %s227
        %p229 = pneg %p37
        %p230 = pneg %p34
        %p231 = pneg %p58
        %p232 = pneg %p55
        %p233 = pneg %p79
        %p234 = pneg %p76
        %p235 = pneg %p100
        %p236 = pneg %p97
        %p237 = pneg %p121
        %p238 = pneg %p118
        %p239 = pneg %p147
        %p240 = pneg %p144
        %p241 = scmp.lt.s32.totalorder %s16, 1
        %s242 = scalar_select %p241, %s16, 1
        %s243 = smul.addr %s242, 4
        %s244 = smul.addr %s243, 8
        %s245 = scalar_lea.vmem %s5, %s244
        %s246 = smul.u32 2, %s16
        %p247 = scmp.lt.s32.totalorder %s16, 1
        %s248 = scalar_select %p247, %s16, 1
        %s249 = smul.addr %s248, 4
        %s250 = smul.addr %s249, 8
        %s251 = scalar_lea.vmem %s5, %s250
        %v252 = vld [vmem:[%s221] sm:$0xff]
        %v253 = vld [vmem:[%s221 + $0x8] sm:$0xff]
        %v254 = vld [vmem:[%s221 + $0x10] sm:$0xff]
        %v255 = vld [vmem:[%s221 + $0x18] sm:$0xff]
        %v256 = vld [vmem:[%s1] sm:$0xff]
        %v257 = vld [vmem:[%s1 + $0x8] sm:$0xff]
        %259 = vset.pattern.permute.xlu0 0
        %260 = vperm.xlu0 %259, %v256
        %v261 = vpop.permute.xlu0 %260
        %264 = vset.pattern.permute.xlu0 0
        %265 = vperm.xlu0 %264, %v257
        %v266 = vpop.permute.xlu0 %265
        %v268 = vmul.f32 %v252, %v261
        %v269 = vmul.f32 %v253, %v261
        %v270 = vmul.f32 %v254, %v266
        %v271 = vmul.f32 %v255, %v266
        %v272 = vld [vmem:[%s2] sm:$0xff]
        %v273 = vld [vmem:[%s2 + $0x8] sm:$0xff]
        %275 = vset.pattern.permute.xlu0 0
        %276 = vperm.xlu0 %275, %v272
        %v277 = vpop.permute.xlu0 %276
        %280 = vset.pattern.permute.xlu0 0
        %281 = vperm.xlu0 %280, %v273
        %v282 = vpop.permute.xlu0 %281
        %v284 = vadd.f32 %v268, %v277
        %v285 = vadd.f32 %v269, %v277
        %v286 = vadd.f32 %v270, %v282
        %v287 = vadd.f32 %v271, %v282
        %v288 = vmax.f32 %v284, 0.0
        %v289 = vmax.f32 %v285, 0.0
        %v290 = vmax.f32 %v286, 0.0
        %v291 = vmax.f32 %v287, 0.0
        %v292 = vld [vmem:[%s3] sm:$0xff]
        %v293 = vld [vmem:[%s3 + $0x8] sm:$0xff]
        %v294 = vld [vmem:[%s3 + $0x10] sm:$0xff]
        %v295 = vld [vmem:[%s3 + $0x18] sm:$0xff]
        %v296 = vld [vmem:[%s4] sm:$0xff]
        %v297 = vld [vmem:[%s4 + $0x8] sm:$0xff]
        %v298 = vld [vmem:[%s4 + $0x10] sm:$0xff]
        %v299 = vld [vmem:[%s4 + $0x18] sm:$0xff]
        %301 = vset.pattern.permute.xlu0 0
        %302 = vperm.xlu0 %301, %v296
        %v303 = vpop.permute.xlu0 %302
        %306 = vset.pattern.permute.xlu0 0
        %307 = vperm.xlu0 %306, %v297
        %v308 = vpop.permute.xlu0 %307
        %311 = vset.pattern.permute.xlu0 0
        %312 = vperm.xlu0 %311, %v298
        %v313 = vpop.permute.xlu0 %312
        %316 = vset.pattern.permute.xlu0 0
        %317 = vperm.xlu0 %316, %v299
        %v318 = vpop.permute.xlu0 %317
        %vm320 = vcmask 130048
        %v322 = vsel %vm320, %v292, 0
        %v325 = vsel %vm320, %v293, 0
        %v328 = vsel %vm320, %v294, 0
        %v331 = vsel %vm320, %v295, 0
        %333 = vmatprep.subr.mxu0 %v289
        %334 = vmatpush1.msra.mxu0 %v288
        %335 = vmatprep.subr.mxu0 %v291
        %336 = vmatpush1.msra.mxu0 %v290
        %337 = vmatprep.subr.mxu0 0.0
        %338 = vmatpush1.msra.mxu0 0.0
        %339 = vmatprep.subr.mxu0 0.0
        %340 = vmatpush1.msra.mxu0 0.0
        %341 = vmatprep.subr.mxu0 0.0
        %342 = vmatpush1.msra.mxu0 0.0
        %343 = vmatprep.subr.mxu0 0.0
        %344 = vmatpush1.msra.mxu0 0.0
        %345 = vmatprep.subr.mxu0 0.0
        %346 = vmatpush1.msra.mxu0 0.0
        %347 = vmatprep.subr.mxu0 0.0
        %348 = vmatpush1.msra.mxu0 0.0
        %349 = vmatprep.subr.mxu0 0.0
        %350 = vmatpush1.msra.mxu0 0.0
        %351 = vmatprep.subr.mxu0 0.0
        %352 = vmatpush1.msra.mxu0 0.0
        %353 = vmatprep.subr.mxu0 0.0
        %354 = vmatpush1.msra.mxu0 0.0
        %355 = vmatprep.subr.mxu0 0.0
        %356 = vmatpush1.msra.mxu0 0.0
        %357 = vmatprep.subr.mxu0 0.0
        %358 = vmatpush1.msra.mxu0 0.0
        %359 = vmatprep.subr.mxu0 0.0
        %360 = vmatpush1.msra.mxu0 0.0
        %361 = vmatprep.subr.mxu0 0.0
        %362 = vmatpush1.msra.mxu0 0.0
        %363 = vmatprep.subr.mxu0 0.0
        %364 = vmatpush1.msra.mxu0 0.0
        %365 = vmatprep.subr.mxu0 0.0
        %366 = vmatpush1.msra.mxu0 0.0
        %367 = vmatprep.subr.mxu0 0.0
        %368 = vmatpush1.msra.mxu0 0.0
        %369 = vmatprep.subr.mxu0 0.0
        %370 = vmatpush1.msra.mxu0 0.0
        %371 = vmatprep.subr.mxu0 0.0
        %372 = vmatpush1.msra.mxu0 0.0
        %373 = vmatprep.subr.mxu0 0.0
        %374 = vmatpush1.msra.mxu0 0.0
        %375 = vmatprep.subr.mxu0 0.0
        %376 = vmatpush1.msra.mxu0 0.0
        %377 = vmatprep.subr.mxu0 0.0
        %378 = vmatpush1.msra.mxu0 0.0
        %379 = vmatprep.subr.mxu0 0.0
        %380 = vmatpush1.msra.mxu0 0.0
        %381 = vmatprep.subr.mxu0 0.0
        %382 = vmatpush1.msra.mxu0 0.0
        %383 = vmatprep.subr.mxu0 0.0
        %384 = vmatpush1.msra.mxu0 0.0
        %385 = vmatprep.subr.mxu0 0.0
        %386 = vmatpush1.msra.mxu0 0.0
        %387 = vmatprep.subr.mxu0 0.0
        %388 = vmatpush1.msra.mxu0 0.0
        %389 = vmatprep.subr.mxu0 0.0
        %390 = vmatpush1.msra.mxu0 0.0
        %391 = vmatprep.subr.mxu0 0.0
        %392 = vmatpush1.msra.mxu0 0.0
        %393 = vmatprep.subr.mxu0 0.0
        %394 = vmatpush1.msra.mxu0 0.0
        %395 = vmatprep.subr.mxu0 0.0
        %396 = vmatpush1.msra.mxu0 0.0
        %397 = vmatprep.mubr.f32.mxu0 0.0
        %398 = vmatmul.mubr.f32.gmra.mrb[0].mxu0 %v322
        %v399 = vpop.f32.mrb[0].mxu0
        %v400 = vadd.f32 %v303, %v399
        %v401 = vpop.f32.mrb[0].mxu0
        %v402 = vadd.f32 %v303, %v401
        %403 = vmatprep.mubr.f32.mxu0 0.0
        %404 = vmatmul.mubr.f32.gmra.mrb[0].mxu0 %v325
        %v405 = vpop.f32.mrb[0].mxu0
        %v406 = vadd.f32 %v308, %v405
        %v407 = vpop.f32.mrb[0].mxu0
        %v408 = vadd.f32 %v308, %v407
        %409 = vmatprep.mubr.f32.mxu0 0.0
        %410 = vmatmul.mubr.f32.gmra.mrb[0].mxu0 %v328
        %v411 = vpop.f32.mrb[0].mxu0
        %v412 = vadd.f32 %v313, %v411
        %v413 = vpop.f32.mrb[0].mxu0
        %v414 = vadd.f32 %v313, %v413
        %415 = vmatprep.mubr.f32.mxu0 0.0
        %416 = vmatmul.mubr.f32.gmra.mrb[0].mxu0 %v331
        %v417 = vpop.f32.mrb[0].mxu0
        %v418 = vadd.f32 %v318, %v417
        %v419 = vpop.f32.mrb[0].mxu0
        %v420 = vadd.f32 %v318, %v419
        %421 = vdwg.mxu0
        %v422 = vadd.f32 %v400, %v402
        %423 = vadd.xlane.f32.xlu0 %v422
        %v424 = vpop.xlane.xlu0 %423
        %v425 = vadd.f32 %v406, %v408
        %426 = vadd.xlane.f32.xlu0 %v425
        %v427 = vpop.xlane.xlu0 %426
        %v428 = vadd.f32 %v412, %v414
        %429 = vadd.xlane.f32.xlu0 %v428
        %v430 = vpop.xlane.xlu0 %429
        %v431 = vadd.f32 %v418, %v420
        %432 = vadd.xlane.f32.xlu0 %v431
        %v433 = vpop.xlane.xlu0 %432
        %v434 = vmul.f32 %v424, 0.00390625
        %v435 = vmul.f32 %v427, 0.00390625
        %v436 = vmul.f32 %v430, 0.00390625
        %v437 = vmul.f32 %v433, 0.00390625
        %v438 = vsub.f32 %v400, %v434
        %v439 = vsub.f32 %v402, %v434
        %v440 = vsub.f32 %v406, %v435
        %v441 = vsub.f32 %v408, %v435
        %v442 = vsub.f32 %v412, %v436
        %v443 = vsub.f32 %v414, %v436
        %v444 = vsub.f32 %v418, %v437
        %v445 = vsub.f32 %v420, %v437
        %v446 = vmul.f32 %v438, %v438
        %v447 = vmul.f32 %v439, %v439
        %v448 = vmul.f32 %v440, %v440
        %v449 = vmul.f32 %v441, %v441
        %v450 = vmul.f32 %v442, %v442
        %v451 = vmul.f32 %v443, %v443
        %v452 = vmul.f32 %v444, %v444
        %v453 = vmul.f32 %v445, %v445
        %v454 = vadd.f32 %v446, %v447
        %455 = vadd.xlane.f32.xlu0 %v454
        %v456 = vpop.xlane.xlu0 %455
        %v457 = vadd.f32 %v448, %v449
        %458 = vadd.xlane.f32.xlu0 %v457
        %v459 = vpop.xlane.xlu0 %458
        %v460 = vadd.f32 %v450, %v451
        %461 = vadd.xlane.f32.xlu0 %v460
        %v462 = vpop.xlane.xlu0 %461
        %v463 = vadd.f32 %v452, %v453
        %464 = vadd.xlane.f32.xlu0 %v463
        %v465 = vpop.xlane.xlu0 %464
        %vm466 = vcmask 7168
        %v467 = vsel %vm466, %v424, %v456
        %v468 = vsel %vm466, %v427, %v459
        %v469 = vsel %vm466, %v430, %v462
        %v470 = vsel %vm466, %v433, %v465
        %vm471 = vcmask 15360
        %472 = vst.msk [vmem:[%s251] sm:$0xff] %vm471, %v467
        %473 = vst.msk [vmem:[%s251 + $0x8] sm:$0xff] %vm471, %v468
        %474 = vst.msk [vmem:[%s251 + $0x10] sm:$0xff] %vm471, %v469
        %475 = vst.msk [vmem:[%s251 + $0x18] sm:$0xff] %vm471, %v470
        %p476 = scmp.lt.s32.totalorder %s16, 1
        %s477 = scalar_select %p476, %s16, 1
        %s478 = smul.addr %s477, 4
        %s479 = smul.addr %s478, 8
        %s480 = scalar_lea.vmem %s5, %s479
        // Predicated region
        $region64: #{decoder_block_forward.6} parent=58 // pred_check
          %p481 = pneg %p144
        $region65: #{decoder_block_forward.6} parent=58 // pred_check_branch
          %483 = sbr.rel (%p481) target = $region67
        $region66: #{decoder_block_forward.6} parent=58 // pred_region
          _
        $region67: #{decoder_block_forward.6} parent=58 // pred_fallthru
          _
      $region59: #{decoder_block_forward.6} parent=5 // pred_fallthru
        _
      %p484 = scmp.le.s32.totalorder 2, %s11
      // Predicated region
      $region68: #{decoder_block_forward.6} parent=5 // pred_check
        %p485 = pneg %p484
      $region69: #{decoder_block_forward.6} parent=5 // pred_check_branch
        %487 = sbr.rel (%p485) target = $region71
      $region70: #{decoder_block_forward.6} parent=5 // pred_region
        %s488 = ssub.s32 %s11, 2
        // Predicated region
        $region72: #{decoder_block_forward.6} parent=70 // pred_check
          %p489 = pneg %p150
        $region73: #{decoder_block_forward.6} parent=70 // pred_check_branch
          %491 = sbr.rel (%p489) target = $region75
        $region74: #{decoder_block_forward.6} parent=70 // pred_region
          %p492 = scmp.lt.s32.totalorder %s17, 1
          %s493 = scalar_select %p492, %s17, 1
          %s494 = smul.addr %s493, 4
          %s495 = smul.addr %s494, 8
          %s496 = scalar_lea.vmem %s5, %s495
        $region75: #{decoder_block_forward.6} parent=70 // pred_fallthru
          _
      $region71: #{decoder_block_forward.6} parent=5 // pred_fallthru
        _
    $region6: #{decoder_block_forward.6} parent=1 // loop_footer
      %s15 = sadd.s32 1, %s11
    $region7: #{decoder_block_forward.6} parent=1 // loop_footer_branch
      %10 = sbr.rel target = $region3
    $region8: #{decoder_block_forward.6} parent=1 // loop_exit
      _

</llo_original>
